<compile_context>
chip_gen: v6e
topology: v6e:2x2x1
jax: 0.10.0
libtpu: 0.0.40
codegen_flags: <defaults>
</compile_context>

<pallas_src>
import functools
import math

import jax
import jax.numpy as jnp
from jax.experimental import pallas as pl
from jax.experimental.pallas import tpu as pltpu


# ----------------------------- Pallas kernel -----------------------------
def _gp_kernel(x_ref, w_ref, b_ref, cos_ref, sina_ref, sinb_ref, mask_ref, o_ref,
               *, head_size):
    # One (batch, head) grid step.
    # x_ref:    (1, Sp, H)   bf16 hidden states for this batch element
    # w_ref:    (H, 2*D)     bf16 per-head [q_h | k_h] weights, pre-scaled by D**-0.25
    # b_ref:    (1, 2*D)     f32  per-head [q_h | k_h] bias,    pre-scaled by D**-0.25
    # cos/sina/sinb: (Sp, D) f32  RoPE tables (sign-split sines for the roll trick)
    # mask_ref: (Sp, Sp)     f32  additive causal mask, already /sqrt(D)
    # o_ref:    (1, 1, Sp, Sp)    logits slab for this (batch, head)
    D = head_size

    x = x_ref[0]                                             # (Sp, H) bf16
    # Per-head projection on the MXU, f32 accumulation.
    z = jnp.dot(x, w_ref[...], preferred_element_type=jnp.float32) + b_ref[...]
    qw = z[:, :D]                                            # (Sp, D) f32
    kw = z[:, D:]                                            # (Sp, D) f32

    cos = cos_ref[...]
    sina = sina_ref[...]                                     # -sin on even lanes, 0 on odd
    sinb = sinb_ref[...]                                     # +sin on odd lanes,  0 on even

    # RoPE "rotate pairs": qw2[2i] = -qw[2i+1], qw2[2i+1] = qw[2i].
    # roll(qw, D-1)[j] = qw[j+1]; roll(qw, 1)[j] = qw[j-1].  Wrap-around lanes
    # land only where sina/sinb are zero, so the full-width roll is safe.
    q_next = pltpu.roll(qw, shift=D - 1, axis=1)
    q_prev = pltpu.roll(qw, shift=1, axis=1)
    rot = q_next * sina + q_prev * sinb                      # = qw2 * sin_pos
    # Faithful to the PyTorch source: kw2 is built from qw (kw2 == qw2).
    q_rot = (qw * cos + rot).astype(jnp.bfloat16)
    k_rot = (kw * cos + rot).astype(jnp.bfloat16)

    # QK^T, contracting the last dim of both operands (no k.T materialization).
    logits = jax.lax.dot_general(
        q_rot, k_rot, (((1,), (1,)), ((), ())),
        preferred_element_type=jnp.float32)                  # (Sp, Sp) f32

    # Scale already folded into weights; mask is additive and pre-divided.
    o_ref[0, 0] = (logits + mask_ref[...]).astype(o_ref.dtype)


def _invariant_spec(shape, index_map):
    """Grid-invariant input: single pipeline buffer (fallback to default if
    pipeline_mode is unavailable in this JAX version)."""
    try:
        return pl.BlockSpec(shape, index_map, pipeline_mode=pl.Buffered(1))
    except TypeError:
        return pl.BlockSpec(shape, index_map)


# -------------------- one-time constant preparation -----------------------
def prepare_global_pointer_head(W, b, heads, head_size, seq_pad):
    """Hoisted out of the per-call path: de-interleave/scale gpfc weights into
    per-head-contiguous [q_h | k_h] blocks, build RoPE tables + additive mask."""
    H = W.shape[0]
    D = head_size
    scale = float(D) ** -0.25              # sqrt(1/sqrt(D)), folded into q AND k

    # gpfc column c = head*2D + 2d + {0:q, 1:k}  ->  per-head [q_h | k_h] layout.
    Wqk = (W.reshape(H, heads, D, 2).transpose(0, 1, 3, 2)
           .reshape(H, heads * 2 * D) * scale).astype(jnp.bfloat16)
    bqk = (b.reshape(heads, D, 2).transpose(0, 2, 1)
           .reshape(1, heads * 2 * D) * scale).astype(jnp.float32)

    # PositionalEncoding + repeat_interleave (per head, D wide), plus sign-split
    # sine tables for the roll-based qw2 construction.
    position = jnp.arange(seq_pad, dtype=jnp.float32)[:, None]
    div_term = jnp.exp(jnp.arange(0, D, 2, dtype=jnp.float32)
                       * (-math.log(10000.0) / D))
    sin = jnp.repeat(jnp.sin(position * div_term), 2, axis=-1)     # (Sp, D)
    cos = jnp.repeat(jnp.cos(position * div_term), 2, axis=-1)     # (Sp, D)
    lane_par = jnp.arange(D) % 2
    sin_a = jnp.where(lane_par == 0, -sin, 0.0).astype(jnp.float32)
    sin_b = jnp.where(lane_par == 1, sin, 0.0).astype(jnp.float32)

    # Additive causal mask, pre-divided by sqrt(D): kernel does logits + mask.
    mask_val = 1e11 / (float(D) ** 0.5)
    r = jnp.arange(seq_pad)
    mask_add = jnp.where(r[:, None] > r[None, :], -mask_val, 0.0).astype(jnp.float32)

    return dict(Wqk=Wqk, bqk=bqk, cos=cos.astype(jnp.float32), sin_a=sin_a,
                sin_b=sin_b, mask_add=mask_add, heads=heads, head_size=D,
                seq_pad=seq_pad)


# ------------------------------ wrapper ------------------------------------
def global_pointer_logits(hidden, consts, out_dtype=jnp.bfloat16):
    """hidden: (B, S, H) f32. consts: from prepare_global_pointer_head."""
    B, S, H = hidden.shape
    heads = consts["heads"]
    D = consts["head_size"]
    Sp = consts["seq_pad"]
    assert Sp >= S and Sp % 128 == 0

    # Zero-pad sequence to lane-dense multiple of 128; bf16 MXU operand.
    x_p = hidden if S == Sp else jnp.pad(hidden, ((0, 0), (0, Sp - S), (0, 0)))
    x_p = x_p.astype(jnp.bfloat16)

    kernel = functools.partial(_gp_kernel, head_size=D)
    out_itemsize = jnp.dtype(out_dtype).itemsize

    cost = pl.CostEstimate(
        flops=B * heads * (2 * Sp * H * 2 * D + 2 * Sp * Sp * D),
        transcendentals=0,
        bytes_accessed=(B * Sp * H * 2 + H * heads * 2 * D * 2
                        + heads * 2 * D * 4 + 3 * Sp * D * 4 + Sp * Sp * 4
                        + B * heads * Sp * Sp * out_itemsize))

    # Explicit scoped-VMEM budget from actual block + temporary sizes,
    # clamped to v7x's 64 MiB physical VMEM.
    block_bytes = (2 * Sp * H * 2          # x (bf16, double-buffered)
                   + 2 * H * 2 * D * 2     # W  (bf16, double-buffered)
                   + 2 * 2 * D * 4         # bias
                   + 3 * Sp * D * 4        # RoPE tables (single-buffered)
                   + Sp * Sp * 4           # additive mask (single-buffered)
                   + 2 * Sp * Sp * out_itemsize)   # out (double-buffered)
    temp_bytes = (Sp * 2 * D * 4 + 2 * Sp * 2 * D * 2
                  + Sp * Sp * 4 + Sp * Sp * out_itemsize)
    vmem_limit = int(min(max(2 * (block_bytes + temp_bytes), 32 * 1024 * 1024),
                         64 * 1024 * 1024))

    out = pl.pallas_call(
        kernel,
        out_shape=jax.ShapeDtypeStruct((B, heads, Sp, Sp), out_dtype),
        grid_spec=pltpu.PrefetchScalarGridSpec(
            num_scalar_prefetch=0,
            grid=(B, heads),
            in_specs=[
                pl.BlockSpec((1, Sp, H), lambda bi, hi: (bi, 0, 0)),
                pl.BlockSpec((H, 2 * D), lambda bi, hi: (0, hi)),
                pl.BlockSpec((1, 2 * D), lambda bi, hi: (0, hi)),
                _invariant_spec((Sp, D), lambda bi, hi: (0, 0)),
                _invariant_spec((Sp, D), lambda bi, hi: (0, 0)),
                _invariant_spec((Sp, D), lambda bi, hi: (0, 0)),
                _invariant_spec((Sp, Sp), lambda bi, hi: (0, 0)),
            ],
            out_specs=pl.BlockSpec((1, 1, Sp, Sp), lambda bi, hi: (bi, hi, 0, 0)),
        ),
        compiler_params=pltpu.CompilerParams(
            dimension_semantics=("parallel", "parallel"),
            vmem_limit_bytes=vmem_limit),
        cost_estimate=cost,
    )(x_p, consts["Wqk"], consts["bqk"], consts["cos"], consts["sin_a"],
      consts["sin_b"], consts["mask_add"])

    # Padded rows hold bias-only junk logits -> slice them off; keep bf16
    # (no extra full-slab f32 pass; consumers cast only if they need f32).
    return out if S == Sp else out[:, :, :S, :S]


# --------------------------- plain-JAX glue -------------------------------
def layer_norm(x, gamma, beta, eps=1e-12):
    m = x.mean(-1, keepdims=True)
    v = ((x - m) ** 2).mean(-1, keepdims=True)
    return (x - m) / jnp.sqrt(v + eps) * gamma + beta


def bert_embeddings(params, input_ids, token_type_ids):
    B, S = input_ids.shape
    e = (params["word_emb"][input_ids]
         + params["type_emb"][token_type_ids]
         + params["pos_emb"][jnp.arange(S)][None, :, :])
    # dropout is identity in eval mode
    return layer_norm(e, params["ln_g"], params["ln_b"])


def model_forward(params, gp_consts, input_ids, token_type_ids, attention_mask):
    seq_out = bert_embeddings(params, input_ids, token_type_ids)
    # (forward is exercised with mask=None, global_label=None -> logits only)
    logits = global_pointer_logits(seq_out, gp_consts)
    return logits, None


# --------------------- pure-JAX reference (for checking) ------------------
def gp_reference(hidden, W, b, heads, D):
    B, S, H = hidden.shape
    z = hidden @ W + b
    gpin = z.reshape(B, S, heads, D, 2)
    qw, kw = gpin[..., 0], gpin[..., 1]
    position = jnp.arange(S, dtype=jnp.float32)[:, None]
    div_term = jnp.exp(jnp.arange(0, D, 2, dtype=jnp.float32)
                       * (-math.log(10000.0) / D))
    pe = jnp.zeros((S, D), jnp.float32)
    pe = pe.at[:, 0::2].set(jnp.sin(position * div_term))
    pe = pe.at[:, 1::2].set(jnp.cos(position * div_term))
    pos = pe[None]
    cos_pos = jnp.repeat(pos[..., None, 1::2], 2, -1)
    sin_pos = jnp.repeat(pos[..., None, 0::2], 2, -1)
    qw2 = jnp.stack([-qw[..., 1::2], qw[..., 0::2]], axis=-1).reshape(qw.shape)
    kw2 = qw2  # same (intentional) asymmetry as the torch source
    q = qw * cos_pos + qw2 * sin_pos
    k = kw * cos_pos + kw2 * sin_pos
    logits = jnp.einsum('bmhd,bnhd->bhmn', q, k)
    tri = jnp.tril(jnp.ones((S, S), jnp.float32), k=-1)
    return (logits - tri * 1e11) / (D ** 0.5)


# -------------------------------- main -------------------------------------
if __name__ == "__main__":
    B, S = 2, 8
    HIDDEN = 32          # hidden_size of the (synthetic) backbone
    VOCAB, TYPES, MAX_POS = 100, 2, 64
    HEADS, HEAD_SIZE = 2, 64

    key = jax.random.PRNGKey(0)
    ks = jax.random.split(key, 8)
    params = {
        "word_emb": 0.02 * jax.random.normal(ks[0], (VOCAB, HIDDEN), jnp.float32),
        "pos_emb":  0.02 * jax.random.normal(ks[1], (MAX_POS, HIDDEN), jnp.float32),
        "type_emb": 0.02 * jax.random.normal(ks[2], (TYPES, HIDDEN), jnp.float32),
        "ln_g": jnp.ones((HIDDEN,), jnp.float32),
        "ln_b": jnp.zeros((HIDDEN,), jnp.float32),
        "gpfc_aspect_w": 0.05 * jax.random.normal(
            ks[3], (HIDDEN, HEADS * HEAD_SIZE * 2), jnp.float32),
        "gpfc_aspect_b": 0.01 * jax.random.normal(
            ks[4], (HEADS * HEAD_SIZE * 2,), jnp.float32),
    }

    input_ids = jax.random.randint(ks[5], (B, S), 1, VOCAB)
    token_type_ids = jnp.zeros((B, S), jnp.int32)
    attention_mask = jnp.ones((B, S), jnp.float32)

    # One-time prep (hoisted out of the per-call path).
    Sp = max(128, -(-S // 128) * 128)
    gp_consts = prepare_global_pointer_head(
        params["gpfc_aspect_w"], params["gpfc_aspect_b"], HEADS, HEAD_SIZE, Sp)

    logits, loss = model_forward(params, gp_consts, input_ids, token_type_ids,
                                 attention_mask)
    logits = jax.block_until_ready(logits)

    # numeric check against a pure-f32 JAX reference of the same math
    # (tolerance accounts for bf16 MXU operands + bf16 logits in the kernel).
    seq_out = bert_embeddings(params, input_ids, token_type_ids)
    ref = gp_reference(seq_out, params["gpfc_aspect_w"],
                       params["gpfc_aspect_b"], HEADS, HEAD_SIZE)
    assert logits.shape == (B, HEADS, S, S)
    assert jnp.allclose(logits.astype(jnp.float32), ref,
                        rtol=2e-2, atol=2e-2), "mismatch vs reference"

    print("KERNEL_OK")
</pallas_src>

<mosaic_0001>
module attributes {stable_mosaic.version = 11 : i64} {
  func.func @_gp_kernel(%arg0: i32, %arg1: i32, %arg2: memref<1x128x32xbf16, #tpu.memory_space<vmem>>, %arg3: memref<32x128xbf16, #tpu.memory_space<vmem>>, %arg4: memref<1x128xf32, #tpu.memory_space<vmem>>, %arg5: memref<128x64xf32, #tpu.memory_space<vmem>>, %arg6: memref<128x64xf32, #tpu.memory_space<vmem>>, %arg7: memref<128x64xf32, #tpu.memory_space<vmem>>, %arg8: memref<128x128xf32, #tpu.memory_space<vmem>>, %arg9: memref<1x1x128x128xbf16, #tpu.memory_space<vmem>>) attributes {dimension_semantics = [#tpu.dimension_semantics<parallel>, #tpu.dimension_semantics<parallel>], iteration_bounds = array<i64: 2, 2>, scalar_prefetch = 0 : i64, scratch_operands = 0 : i64, tpu.core_type = #tpu.core_type<tc>, window_params = [{transform_indices = @transform_0, window_bounds = array<i64: 1, 128, 32>}, {transform_indices = @transform_1, window_bounds = array<i64: 32, 128>}, {transform_indices = @transform_2, window_bounds = array<i64: 1, 128>}, {pipeline_mode = #tpu.pipeline_mode<synchronous>, transform_indices = @transform_3, window_bounds = array<i64: 128, 64>}, {pipeline_mode = #tpu.pipeline_mode<synchronous>, transform_indices = @transform_4, window_bounds = array<i64: 128, 64>}, {pipeline_mode = #tpu.pipeline_mode<synchronous>, transform_indices = @transform_5, window_bounds = array<i64: 128, 64>}, {pipeline_mode = #tpu.pipeline_mode<synchronous>, transform_indices = @transform_6, window_bounds = array<i64: 128, 128>}, {transform_indices = @transform_7, window_bounds = array<i64: 1, 1, 128, 128>}]} {
    %c0 = arith.constant 0 : index
    %c0_0 = arith.constant 0 : index
    %c0_1 = arith.constant 0 : index
    %0 = vector.load %arg2[%c0, %c0_0, %c0_1] : memref<1x128x32xbf16, #tpu.memory_space<vmem>>, vector<1x128x32xbf16>
    %1 = vector.shape_cast %0 : vector<1x128x32xbf16> to vector<128x32xbf16>
    %c0_2 = arith.constant 0 : index
    %c0_3 = arith.constant 0 : index
    %2 = vector.load %arg3[%c0_2, %c0_3] : memref<32x128xbf16, #tpu.memory_space<vmem>>, vector<32x128xbf16>
    %cst = arith.constant dense<0.000000e+00> : vector<128x128xf32>
    %3 = tpu.matmul %1, %2, %cst {dimension_numbers = #tpu.dot_dimension_numbers<[1], [0], [0], [1], [0, 0, 1, 1], [], []>} : vector<128x32xbf16>, vector<32x128xbf16>, vector<128x128xf32> -> vector<128x128xf32>
    %c0_4 = arith.constant 0 : index
    %c0_5 = arith.constant 0 : index
    %4 = vector.load %arg4[%c0_4, %c0_5] : memref<1x128xf32, #tpu.memory_space<vmem>>, vector<1x128xf32>
    %5 = vector.broadcast %4 : vector<1x128xf32> to vector<128x128xf32>
    %6 = arith.addf %3, %5 : vector<128x128xf32>
    %7 = vector.extract_strided_slice %6 {offsets = [0, 0], sizes = [128, 64], strides = [1, 1]} : vector<128x128xf32> to vector<128x64xf32>
    %8 = vector.extract_strided_slice %6 {offsets = [0, 64], sizes = [128, 64], strides = [1, 1]} : vector<128x128xf32> to vector<128x64xf32>
    %c0_6 = arith.constant 0 : index
    %c0_7 = arith.constant 0 : index
    %9 = vector.load %arg5[%c0_6, %c0_7] : memref<128x64xf32, #tpu.memory_space<vmem>>, vector<128x64xf32>
    %c0_8 = arith.constant 0 : index
    %c0_9 = arith.constant 0 : index
    %10 = vector.load %arg6[%c0_8, %c0_9] : memref<128x64xf32, #tpu.memory_space<vmem>>, vector<128x64xf32>
    %c0_10 = arith.constant 0 : index
    %c0_11 = arith.constant 0 : index
    %11 = vector.load %arg7[%c0_10, %c0_11] : memref<128x64xf32, #tpu.memory_space<vmem>>, vector<128x64xf32>
    %c63_i32 = arith.constant 63 : i32
    %12 = tpu.dynamic_rotate %7 by %c63_i32 dim 1 : vector<128x64xf32>, i32 -> vector<128x64xf32>
    %c1_i32 = arith.constant 1 : i32
    %13 = tpu.dynamic_rotate %7 by %c1_i32 dim 1 : vector<128x64xf32>, i32 -> vector<128x64xf32>
    %14 = arith.mulf %12, %10 : vector<128x64xf32>
    %15 = arith.mulf %13, %11 : vector<128x64xf32>
    %16 = arith.addf %14, %15 : vector<128x64xf32>
    %17 = arith.mulf %7, %9 : vector<128x64xf32>
    %18 = arith.addf %17, %16 : vector<128x64xf32>
    %19 = arith.truncf %18 : vector<128x64xf32> to vector<128x64xbf16>
    %20 = arith.mulf %8, %9 : vector<128x64xf32>
    %21 = arith.addf %20, %16 : vector<128x64xf32>
    %22 = arith.truncf %21 : vector<128x64xf32> to vector<128x64xbf16>
    %cst_12 = arith.constant dense<0.000000e+00> : vector<128x128xf32>
    %23 = tpu.matmul %19, %22, %cst_12 {dimension_numbers = #tpu.dot_dimension_numbers<[1], [1], [0], [0], [0, 0, 1, 0], [], []>} : vector<128x64xbf16>, vector<128x64xbf16>, vector<128x128xf32> -> vector<128x128xf32>
    %c0_13 = arith.constant 0 : index
    %c0_14 = arith.constant 0 : index
    %24 = vector.load %arg8[%c0_13, %c0_14] : memref<128x128xf32, #tpu.memory_space<vmem>>, vector<128x128xf32>
    %25 = arith.addf %23, %24 : vector<128x128xf32>
    %26 = arith.truncf %25 : vector<128x128xf32> to vector<128x128xbf16>
    %c0_15 = arith.constant 0 : index
    %c0_16 = arith.constant 0 : index
    %c0_17 = arith.constant 0 : index
    %c0_18 = arith.constant 0 : index
    %27 = vector.load %arg9[%c0_15, %c0_16, %c0_17, %c0_18] : memref<1x1x128x128xbf16, #tpu.memory_space<vmem>>, vector<1x1x128x128xbf16>
    %28 = vector.shape_cast %27 : vector<1x1x128x128xbf16> to vector<128x128xbf16>
    %29 = vector.shape_cast %26 : vector<128x128xbf16> to vector<1x1x128x128xbf16>
    tpu.vector_store %arg9[%c0_15, %c0_16, %c0_17, %c0_18], %29 {strides = array<i32>} : memref<1x1x128x128xbf16, #tpu.memory_space<vmem>>, vector<1x1x128x128xbf16>,
    return
  }
  func.func @transform_0(%arg0: i32, %arg1: i32) -> (i32, i32, i32) {
    %c0_i32 = arith.constant 0 : i32
    %c0_i32_0 = arith.constant 0 : i32
    %c0_i32_1 = arith.constant 0 : i32
    return %arg0, %c0_i32, %c0_i32_0 : i32, i32, i32
  }
  func.func @transform_1(%arg0: i32, %arg1: i32) -> (i32, i32) {
    %c0_i32 = arith.constant 0 : i32
    %c0_i32_0 = arith.constant 0 : i32
    return %c0_i32, %arg1 : i32, i32
  }
  func.func @transform_2(%arg0: i32, %arg1: i32) -> (i32, i32) {
    %c0_i32 = arith.constant 0 : i32
    %c0_i32_0 = arith.constant 0 : i32
    return %c0_i32, %arg1 : i32, i32
  }
  func.func @transform_3(%arg0: i32, %arg1: i32) -> (i32, i32) {
    %c0_i32 = arith.constant 0 : i32
    %c0_i32_0 = arith.constant 0 : i32
    %c0_i32_1 = arith.constant 0 : i32
    return %c0_i32, %c0_i32_0 : i32, i32
  }
  func.func @transform_4(%arg0: i32, %arg1: i32) -> (i32, i32) {
    %c0_i32 = arith.constant 0 : i32
    %c0_i32_0 = arith.constant 0 : i32
    %c0_i32_1 = arith.constant 0 : i32
    return %c0_i32, %c0_i32_0 : i32, i32
  }
  func.func @transform_5(%arg0: i32, %arg1: i32) -> (i32, i32) {
    %c0_i32 = arith.constant 0 : i32
    %c0_i32_0 = arith.constant 0 : i32
    %c0_i32_1 = arith.constant 0 : i32
    return %c0_i32, %c0_i32_0 : i32, i32
  }
  func.func @transform_6(%arg0: i32, %arg1: i32) -> (i32, i32) {
    %c0_i32 = arith.constant 0 : i32
    %c0_i32_0 = arith.constant 0 : i32
    %c0_i32_1 = arith.constant 0 : i32
    return %c0_i32, %c0_i32_0 : i32, i32
  }
  func.func @transform_7(%arg0: i32, %arg1: i32) -> (i32, i32, i32, i32) {
    %c0_i32 = arith.constant 0 : i32
    %c0_i32_0 = arith.constant 0 : i32
    %c0_i32_1 = arith.constant 0 : i32
    return %arg0, %arg1, %c0_i32, %c0_i32_0 : i32, i32, i32, i32
  }
}

</mosaic_0001>

<llo_original>
// kernel: tpu_custom_call.1
$region0: #{tpu_custom_call.1}
  #allocation0 [shape = 'u32[]', space=smem, size = 0x4, offset = 0x4, fixed_abs, tag = 'smem constant byte address 0x4 - core index']
  #allocation1 [shape = 'u32[144,128]{1,0:T(1,128)}', space=vmem, size = 0x12000, scoped, tag = 'internal scratch']
  %s0 = inlined_call_operand.vmem [shape: bf16[2,128,32], index: 0, kind: input, shape index: {}]
  %s1 = inlined_call_operand.vmem [shape: bf16[32,256], index: 1, kind: input, shape index: {}]
  %s2 = inlined_call_operand.vmem [shape: f32[1,256], index: 2, kind: input, shape index: {}]
  %s3 = inlined_call_operand.vmem [shape: f32[128,64], index: 3, kind: input, shape index: {}]
  %s4 = inlined_call_operand.vmem [shape: f32[128,64], index: 4, kind: input, shape index: {}]
  %s5 = inlined_call_operand.vmem [shape: f32[128,64], index: 5, kind: input, shape index: {}]
  %s6 = inlined_call_operand.vmem [shape: f32[128,128], index: 6, kind: input, shape index: {}]
  %s7 = inlined_call_operand.hbm [shape: bf16[2,2,128,128], index: 7, kind: output, shape index: {}]
  %s8 = sld [smem:[#allocation0]]
  $region102: #{tpu_custom_call.1} parent=0
    _
  %s10 = ssub.s32 1, %s8
  %s11 = scalar_select 0, %s10, %s8
  $region1: #{tpu_custom_call.1} parent=0
    #allocation2 [shape = 'u8[16384]{0}', space=vmem, size = 0x4000, scoped, tag = 'input window, operand 1']
    #allocation3 [shape = 'u8[65536]{0}', space=vmem, size = 0x10000, scoped, tag = 'output window, operand 0']
    #allocation4 [shape = 's32[2]{0}', space=sflag, size = 0x8, scoped, tag = 'scoped memory for tpu_custom_call.1']
    %12 = vsyncpa [#allocation4], 0
    %s13 = scalar_lea.sflag [#allocation4], 1
    %14 = vsyncpa %s13, 0
    loop: start=0, step=1, limit=6
    $region2: #{tpu_custom_call.1} parent=1 // loop_pre_header
      _
    $region3: #{tpu_custom_call.1} parent=1 // loop_header
      %s16 = sphi 0, %s20
      %p17 = scmp.ge.s32.totalorder %s16, 6
      %s23 = sphi 0, %s35
      %s24 = sphi 0, %s31
      %s25 = sphi 0, %s23
      %s26 = sphi 0, %s24
      %s27 = sphi 0, %s25
      %s28 = sphi 0, %s26
      %s38 = sphi 0, %s40
      %s41 = sphi 0, %s38
      %s42 = sphi 0, %s41
      %s58 = sphi 0, %s42
      %s64 = sphi 0, %s66
      %s67 = sphi 0, %s64
      %s68 = sphi 0, %s67
      %s84 = sphi 0, %s68
      %s90 = sphi 0, %s92
      %s93 = sphi 0, %s90
      %s94 = sphi 0, %s93
      %s110 = sphi 0, %s94
      %s114 = sphi 0, %s114
      %s116 = sphi 0, %s114
      %s117 = sphi 0, %s116
      %s131 = sphi 0, %s117
      %s135 = sphi 0, %s135
      %s137 = sphi 0, %s135
      %s138 = sphi 0, %s137
      %s152 = sphi 0, %s138
      %s156 = sphi 0, %s156
      %s158 = sphi 0, %s156
      %s159 = sphi 0, %s158
      %s173 = sphi 0, %s159
      %s177 = sphi 0, %s177
      %s179 = sphi 0, %s177
      %s180 = sphi 0, %s179
      %s194 = sphi 0, %s180
      %s202 = sphi 0, %s204
      %s205 = sphi 0, %s202
      %s206 = sphi 0, %s205
      %s222 = sphi 0, %s206
    $region4: #{tpu_custom_call.1} parent=1 // loop_header_branch
      %19 = sbr.rel (%p17) target = $region8
    $region5: #{tpu_custom_call.1} parent=1 // loop_body
      %s21 = ssub.s32 %s16, 1
      %s22 = ssub.s32 %s16, 2
      %s29 = sadd.s32 1, %s24
      %p30 = scmp.ge.s32.totalorder %s29, 2
      %s31 = scalar_select %p30, 0, %s29
      %s32 = sadd.s32 1, %s23
      %s33 = scalar_select %p30, %s32, %s23
      %p34 = scmp.ge.s32.totalorder %s33, 2
      %s35 = scalar_select %p34, 0, %s33
      %s36 = ssub.s32 %s23, %s35
      %p37 = scmp.eq.s32.totalorder %s36, 0
      %s39 = sadd.s32 %s38, 1
      %s40 = scalar_select %p37, %s38, %s39
      %p43 = pneg %p37
      %p44 = scmp.eq.s32.totalorder %s16, 3
      %p45 = por %p43, %p44
      %p46 = scmp.ne.s32.totalorder %s38, %s41
      %p47 = scmp.eq.s32.totalorder %s16, 0
      %p48 = por %p46, %p47
      %p49 = scmp.ne.s32.totalorder %s38, %s41
      %p50 = scmp.eq.s32.totalorder %s21, 3
      %p51 = por %p49, %p50
      %p52 = scmp.ne.s32.totalorder %s41, %s42
      %p53 = scmp.eq.s32.totalorder %s21, 0
      %p54 = por %p52, %p53
      %p55 = scmp.ne.s32.totalorder %s41, %s42
      %p56 = scmp.eq.s32.totalorder %s22, 3
      %p57 = por %p55, %p56
      %p59 = scmp.ne.s32.totalorder %s42, %s58
      %p60 = scmp.eq.s32.totalorder %s22, 0
      %p61 = por %p59, %p60
      %s62 = ssub.s32 %s24, %s31
      %p63 = scmp.eq.s32.totalorder %s62, 0
      %s65 = sadd.s32 %s64, 1
      %s66 = scalar_select %p63, %s64, %s65
      %p69 = pneg %p63
      %p70 = scmp.eq.s32.totalorder %s16, 3
      %p71 = por %p69, %p70
      %p72 = scmp.ne.s32.totalorder %s64, %s67
      %p73 = scmp.eq.s32.totalorder %s16, 0
      %p74 = por %p72, %p73
      %p75 = scmp.ne.s32.totalorder %s64, %s67
      %p76 = scmp.eq.s32.totalorder %s21, 3
      %p77 = por %p75, %p76
      %p78 = scmp.ne.s32.totalorder %s67, %s68
      %p79 = scmp.eq.s32.totalorder %s21, 0
      %p80 = por %p78, %p79
      %p81 = scmp.ne.s32.totalorder %s67, %s68
      %p82 = scmp.eq.s32.totalorder %s22, 3
      %p83 = por %p81, %p82
      %p85 = scmp.ne.s32.totalorder %s68, %s84
      %p86 = scmp.eq.s32.totalorder %s22, 0
      %p87 = por %p85, %p86
      %s88 = ssub.s32 %s24, %s31
      %p89 = scmp.eq.s32.totalorder %s88, 0
      %s91 = sadd.s32 %s90, 1
      %s92 = scalar_select %p89, %s90, %s91
      %p95 = pneg %p89
      %p96 = scmp.eq.s32.totalorder %s16, 3
      %p97 = por %p95, %p96
      %p98 = scmp.ne.s32.totalorder %s90, %s93
      %p99 = scmp.eq.s32.totalorder %s16, 0
      %p100 = por %p98, %p99
      %p101 = scmp.ne.s32.totalorder %s90, %s93
      %p102 = scmp.eq.s32.totalorder %s21, 3
      %p103 = por %p101, %p102
      %p104 = scmp.ne.s32.totalorder %s93, %s94
      %p105 = scmp.eq.s32.totalorder %s21, 0
      %p106 = por %p104, %p105
      %p107 = scmp.ne.s32.totalorder %s93, %s94
      %p108 = scmp.eq.s32.totalorder %s22, 3
      %p109 = por %p107, %p108
      %p111 = scmp.ne.s32.totalorder %s94, %s110
      %p112 = scmp.eq.s32.totalorder %s22, 0
      %p113 = por %p111, %p112
      %s115 = sadd.s32 %s114, 1
      %p118 = scmp.eq.s32.totalorder %s16, 3
      %p119 = scmp.ne.s32.totalorder %s114, %s116
      %p120 = scmp.eq.s32.totalorder %s16, 0
      %p121 = por %p119, %p120
      %p122 = scmp.ne.s32.totalorder %s114, %s116
      %p123 = scmp.eq.s32.totalorder %s21, 3
      %p124 = por %p122, %p123
      %p125 = scmp.ne.s32.totalorder %s116, %s117
      %p126 = scmp.eq.s32.totalorder %s21, 0
      %p127 = por %p125, %p126
      %p128 = scmp.ne.s32.totalorder %s116, %s117
      %p129 = scmp.eq.s32.totalorder %s22, 3
      %p130 = por %p128, %p129
      %p132 = scmp.ne.s32.totalorder %s117, %s131
      %p133 = scmp.eq.s32.totalorder %s22, 0
      %p134 = por %p132, %p133
      %s136 = sadd.s32 %s135, 1
      %p139 = scmp.eq.s32.totalorder %s16, 3
      %p140 = scmp.ne.s32.totalorder %s135, %s137
      %p141 = scmp.eq.s32.totalorder %s16, 0
      %p142 = por %p140, %p141
      %p143 = scmp.ne.s32.totalorder %s135, %s137
      %p144 = scmp.eq.s32.totalorder %s21, 3
      %p145 = por %p143, %p144
      %p146 = scmp.ne.s32.totalorder %s137, %s138
      %p147 = scmp.eq.s32.totalorder %s21, 0
      %p148 = por %p146, %p147
      %p149 = scmp.ne.s32.totalorder %s137, %s138
      %p150 = scmp.eq.s32.totalorder %s22, 3
      %p151 = por %p149, %p150
      %p153 = scmp.ne.s32.totalorder %s138, %s152
      %p154 = scmp.eq.s32.totalorder %s22, 0
      %p155 = por %p153, %p154
      %s157 = sadd.s32 %s156, 1
      %p160 = scmp.eq.s32.totalorder %s16, 3
      %p161 = scmp.ne.s32.totalorder %s156, %s158
      %p162 = scmp.eq.s32.totalorder %s16, 0
      %p163 = por %p161, %p162
      %p164 = scmp.ne.s32.totalorder %s156, %s158
      %p165 = scmp.eq.s32.totalorder %s21, 3
      %p166 = por %p164, %p165
      %p167 = scmp.ne.s32.totalorder %s158, %s159
      %p168 = scmp.eq.s32.totalorder %s21, 0
      %p169 = por %p167, %p168
      %p170 = scmp.ne.s32.totalorder %s158, %s159
      %p171 = scmp.eq.s32.totalorder %s22, 3
      %p172 = por %p170, %p171
      %p174 = scmp.ne.s32.totalorder %s159, %s173
      %p175 = scmp.eq.s32.totalorder %s22, 0
      %p176 = por %p174, %p175
      %s178 = sadd.s32 %s177, 1
      %p181 = scmp.eq.s32.totalorder %s16, 3
      %p182 = scmp.ne.s32.totalorder %s177, %s179
      %p183 = scmp.eq.s32.totalorder %s16, 0
      %p184 = por %p182, %p183
      %p185 = scmp.ne.s32.totalorder %s177, %s179
      %p186 = scmp.eq.s32.totalorder %s21, 3
      %p187 = por %p185, %p186
      %p188 = scmp.ne.s32.totalorder %s179, %s180
      %p189 = scmp.eq.s32.totalorder %s21, 0
      %p190 = por %p188, %p189
      %p191 = scmp.ne.s32.totalorder %s179, %s180
      %p192 = scmp.eq.s32.totalorder %s22, 3
      %p193 = por %p191, %p192
      %p195 = scmp.ne.s32.totalorder %s180, %s194
      %p196 = scmp.eq.s32.totalorder %s22, 0
      %p197 = por %p195, %p196
      %s198 = ssub.s32 %s23, %s35
      %s199 = ssub.s32 %s24, %s31
      %s200 = sor.u32 %s198, %s199
      %p201 = scmp.eq.s32.totalorder %s200, 0
      %s203 = sadd.s32 %s202, 1
      %s204 = scalar_select %p201, %s202, %s203
      %p207 = pneg %p201
      %p208 = scmp.eq.s32.totalorder %s16, 3
      %p209 = por %p207, %p208
      %p210 = scmp.ne.s32.totalorder %s202, %s205
      %p211 = scmp.eq.s32.totalorder %s16, 0
      %p212 = por %p210, %p211
      %p213 = scmp.ne.s32.totalorder %s202, %s205
      %p214 = scmp.eq.s32.totalorder %s21, 3
      %p215 = por %p213, %p214
      %p216 = scmp.ne.s32.totalorder %s205, %s206
      %p217 = scmp.eq.s32.totalorder %s21, 0
      %p218 = por %p216, %p217
      %p219 = scmp.ne.s32.totalorder %s205, %s206
      %p220 = scmp.eq.s32.totalorder %s22, 3
      %p221 = por %p219, %p220
      %p223 = scmp.ne.s32.totalorder %s206, %s222
      %p224 = scmp.eq.s32.totalorder %s22, 0
      %p225 = por %p223, %p224
      %p226 = scmp.le.s32.totalorder 1, %s16
      %p227 = scmp.lt.s32.totalorder %s16, 5
      %p228 = pnand %p226, %p227
      %p229 = pneg %p228
      // Predicated region
      $region9: #{tpu_custom_call.1} parent=5 // pred_check
        _
      $region10: #{tpu_custom_call.1} parent=5 // pred_check_branch
        %231 = sbr.rel (%p228) target = $region12
      $region11: #{tpu_custom_call.1} parent=5 // pred_region
        %s232 = ssub.s32 %s16, 1
        // Predicated region
        $region13: #{tpu_custom_call.1} parent=11 // pred_check
          %p233 = pneg %p127
        $region14: #{tpu_custom_call.1} parent=11 // pred_check_branch
          %235 = sbr.rel (%p233) target = $region16
        $region15: #{tpu_custom_call.1} parent=11 // pred_region
          _
        $region16: #{tpu_custom_call.1} parent=11 // pred_fallthru
          _
        // Predicated region
        $region17: #{tpu_custom_call.1} parent=11 // pred_check
          %p236 = pneg %p148
        $region18: #{tpu_custom_call.1} parent=11 // pred_check_branch
          %238 = sbr.rel (%p236) target = $region20
        $region19: #{tpu_custom_call.1} parent=11 // pred_region
          _
        $region20: #{tpu_custom_call.1} parent=11 // pred_fallthru
          _
        // Predicated region
        $region21: #{tpu_custom_call.1} parent=11 // pred_check
          %p239 = pneg %p169
        $region22: #{tpu_custom_call.1} parent=11 // pred_check_branch
          %241 = sbr.rel (%p239) target = $region24
        $region23: #{tpu_custom_call.1} parent=11 // pred_region
          _
        $region24: #{tpu_custom_call.1} parent=11 // pred_fallthru
          _
        // Predicated region
        $region25: #{tpu_custom_call.1} parent=11 // pred_check
          %p242 = pneg %p190
        $region26: #{tpu_custom_call.1} parent=11 // pred_check_branch
          %244 = sbr.rel (%p242) target = $region28
        $region27: #{tpu_custom_call.1} parent=11 // pred_region
          _
        $region28: #{tpu_custom_call.1} parent=11 // pred_fallthru
          _
      $region12: #{tpu_custom_call.1} parent=5 // pred_fallthru
        _
      %p245 = scmp.lt.s32.totalorder %s16, 4
      // Predicated region
      $region29: #{tpu_custom_call.1} parent=5 // pred_check
        %p246 = pneg %p245
      $region30: #{tpu_custom_call.1} parent=5 // pred_check_branch
        %248 = sbr.rel (%p246) target = $region32
      $region31: #{tpu_custom_call.1} parent=5 // pred_region
        // Predicated region
        $region33: #{tpu_custom_call.1} parent=31 // pred_check
          %p249 = pneg %p48
        $region34: #{tpu_custom_call.1} parent=31 // pred_check_branch
          %251 = sbr.rel (%p249) target = $region36
        $region35: #{tpu_custom_call.1} parent=31 // pred_region
          %p252 = scmp.lt.s32.totalorder %s23, 1
          %s253 = scalar_select %p252, %s23, 1
          %s254 = smul.addr %s253, 16
          %s255 = smul.addr %s254, 4
          %s256 = scalar_lea.vmem %s0, %s255
        $region36: #{tpu_custom_call.1} parent=31 // pred_fallthru
          _
        // Predicated region
        $region37: #{tpu_custom_call.1} parent=31 // pred_check
          %p257 = pneg %p74
        $region38: #{tpu_custom_call.1} parent=31 // pred_check_branch
          %259 = sbr.rel (%p257) target = $region40
        $region39: #{tpu_custom_call.1} parent=31 // pred_region
          %s260 = sand.u32 %s64, 1
          %s261 = sand.u32 %s64, 1
          %s262 = smul.addr %s261, 16
          %s263 = scalar_lea.vmem [#allocation2], %s262
          %s264 = smul.addr %s24, 4
          %s265 = scalar_lea.vmem %s1, %s264
          // Predicated region
          $region41: #{tpu_custom_call.1} parent=39 // pred_check
            _
          $region42: #{tpu_custom_call.1} parent=39 // pred_check_branch
            %267 = sbr.rel (0) target = $region44
          $region43: #{tpu_custom_call.1} parent=39 // pred_region
            // Predicated region
            $region45: #{tpu_custom_call.1} parent=43 // pred_check
              _
            $region46: #{tpu_custom_call.1} parent=43 // pred_check_branch
              %269 = sbr.rel target = $region48
            $region47: #{tpu_custom_call.1} parent=43 // pred_region
              // Predicated region
              $region60: #{tpu_custom_call.1} parent=47 // pred_check
                _
              $region61: #{tpu_custom_call.1} parent=47 // pred_check_branch
                %291 = sbr.rel (0) target = $region63
              $region62: #{tpu_custom_call.1} parent=47 // pred_region
                loop: start=0, step=1, limit=1
                $region64: #{tpu_custom_call.1} parent=62 // loop_pre_header
                  _
                $region65: #{tpu_custom_call.1} parent=62 // loop_header
                  %s293 = sphi 0, %s297
                  %p294 = scmp.ge.s32.totalorder %s293, 1
                  %s298 = sphi %s265, %s265
                  %s299 = sphi %s263, %s263
                $region66: #{tpu_custom_call.1} parent=62 // loop_header_branch
                  %296 = sbr.rel (%p294) target = $region70
                $region67: #{tpu_custom_call.1} parent=62 // loop_body
                  _
                $region68: #{tpu_custom_call.1} parent=62 // loop_footer
                  %s297 = sadd.s32 1, %s293
                $region69: #{tpu_custom_call.1} parent=62 // loop_footer_branch
                  %292 = sbr.rel target = $region65
                $region70: #{tpu_custom_call.1} parent=62 // loop_exit
                  _
                %s301 = ssub.s32 16, 1
                loop: start=0, step=1, limit=1
                $region71: #{tpu_custom_call.1} parent=62 // loop_pre_header
                  _
                $region72: #{tpu_custom_call.1} parent=62 // loop_header
                  %s303 = sphi 0, %s307
                  %p304 = scmp.ge.s32.totalorder %s303, 1
                  %s308 = sphi %s265, %s265
                  %s309 = sphi %s263, %s263
                $region73: #{tpu_custom_call.1} parent=62 // loop_header_branch
                  %306 = sbr.rel (%p304) target = $region77
                $region74: #{tpu_custom_call.1} parent=62 // loop_body
                  %v310 = vld [vmem:[%s308] sm:%s301]
                  %311 = vst [vmem:[%s309] sm:%s301] %v310
                  %v312 = vld [vmem:[%s308 + $0x8] sm:%s301]
                  %313 = vst [vmem:[%s309 + $0x4] sm:%s301] %v312
                  %v314 = vld [vmem:[%s308 + $0x10] sm:%s301]
                  %315 = vst [vmem:[%s309 + $0x8] sm:%s301] %v314
                  %v316 = vld [vmem:[%s308 + $0x18] sm:%s301]
                  %317 = vst [vmem:[%s309 + $0xc] sm:%s301] %v316
                $region75: #{tpu_custom_call.1} parent=62 // loop_footer
                  %s307 = sadd.s32 1, %s303
                $region76: #{tpu_custom_call.1} parent=62 // loop_footer_branch
                  %302 = sbr.rel target = $region72
                $region77: #{tpu_custom_call.1} parent=62 // loop_exit
                  _
              $region63: #{tpu_custom_call.1} parent=47 // pred_fallthru
                _
            $region48: #{tpu_custom_call.1} parent=43 // pred_fallthru
              _
            // Predicated region
            $region49: #{tpu_custom_call.1} parent=43 // pred_check
              _
            $region50: #{tpu_custom_call.1} parent=43 // pred_check_branch
              %271 = sbr.rel (0) target = $region52
            $region51: #{tpu_custom_call.1} parent=43 // pred_region
              %s273 = ssub.s32 16, 1
              loop: start=0, step=1, limit=1
              $region53: #{tpu_custom_call.1} parent=51 // loop_pre_header
                _
              $region54: #{tpu_custom_call.1} parent=51 // loop_header
                %s275 = sphi 0, %s279
                %p276 = scmp.ge.s32.totalorder %s275, 1
                %s280 = sphi %s265, %s265
                %s281 = sphi %s263, %s263
              $region55: #{tpu_custom_call.1} parent=51 // loop_header_branch
                %278 = sbr.rel (%p276) target = $region59
              $region56: #{tpu_custom_call.1} parent=51 // loop_body
                %v282 = vld [vmem:[%s280] sm:%s273]
                %283 = vst [vmem:[%s281] sm:%s273] %v282
                %v284 = vld [vmem:[%s280 + $0x8] sm:%s273]
                %285 = vst [vmem:[%s281 + $0x4] sm:%s273] %v284
                %v286 = vld [vmem:[%s280 + $0x10] sm:%s273]
                %287 = vst [vmem:[%s281 + $0x8] sm:%s273] %v286
                %v288 = vld [vmem:[%s280 + $0x18] sm:%s273]
                %289 = vst [vmem:[%s281 + $0xc] sm:%s273] %v288
              $region57: #{tpu_custom_call.1} parent=51 // loop_footer
                %s279 = sadd.s32 1, %s275
              $region58: #{tpu_custom_call.1} parent=51 // loop_footer_branch
                %274 = sbr.rel target = $region54
              $region59: #{tpu_custom_call.1} parent=51 // loop_exit
                _
            $region52: #{tpu_custom_call.1} parent=43 // pred_fallthru
              _
          $region44: #{tpu_custom_call.1} parent=39 // pred_fallthru
            _
          %318 = vnop
        $region40: #{tpu_custom_call.1} parent=31 // pred_fallthru
          _
        // Predicated region
        $region78: #{tpu_custom_call.1} parent=31 // pred_check
          %p319 = pneg %p100
        $region79: #{tpu_custom_call.1} parent=31 // pred_check_branch
          %321 = sbr.rel (%p319) target = $region81
        $region80: #{tpu_custom_call.1} parent=31 // pred_region
          %p322 = scmp.lt.s32.totalorder %s24, 1
          %s323 = scalar_select %p322, %s24, 1
          %s324 = scalar_lea.vmem %s2, %s323
        $region81: #{tpu_custom_call.1} parent=31 // pred_fallthru
          _
      $region32: #{tpu_custom_call.1} parent=5 // pred_fallthru
        _
      %p325 = scmp.le.s32.totalorder 1, %s16
      %p326 = scmp.lt.s32.totalorder %s16, 5
      %p327 = pnand %p325, %p326
      %p328 = pneg %p327
      // Predicated region
      $region82: #{tpu_custom_call.1} parent=5 // pred_check
        _
      $region83: #{tpu_custom_call.1} parent=5 // pred_check_branch
        %330 = sbr.rel (%p327) target = $region85
      $region84: #{tpu_custom_call.1} parent=5 // pred_region
        %s331 = ssub.s32 %s16, 1
        %s332 = sand.u32 %s67, 1
        %s333 = sand.u32 %s67, 1
        %s334 = smul.addr %s333, 16
        %s335 = scalar_lea.vmem [#allocation2], %s334
        // Predicated region
        $region86: #{tpu_custom_call.1} parent=84 // pred_check
          %p336 = pneg %p80
        $region87: #{tpu_custom_call.1} parent=84 // pred_check_branch
          %338 = sbr.rel (%p336) target = $region89
        $region88: #{tpu_custom_call.1} parent=84 // pred_region
          _
        $region89: #{tpu_custom_call.1} parent=84 // pred_fallthru
          _
        %p339 = scmp.lt.s32.totalorder %s25, 1
        %s340 = scalar_select %p339, %s25, 1
        %s341 = smul.addr %s340, 16
        %s342 = smul.addr %s341, 4
        %s343 = scalar_lea.vmem %s0, %s342
        %p344 = pneg %p54
        %p345 = pneg %p51
        %s346 = sand.u32 %s67, 1
        %s347 = sand.u32 %s67, 1
        %s348 = smul.addr %s347, 16
        %s349 = scalar_lea.vmem [#allocation2], %s348
        %p350 = pneg %p80
        %p351 = pneg %p77
        %p352 = scmp.lt.s32.totalorder %s26, 1
        %s353 = scalar_select %p352, %s26, 1
        %s354 = scalar_lea.vmem %s2, %s353
        %p355 = pneg %p106
        %p356 = pneg %p103
        %p357 = pneg %p127
        %p358 = pneg %p124
        %p359 = pneg %p148
        %p360 = pneg %p145
        %p361 = pneg %p169
        %p362 = pneg %p166
        %p363 = pneg %p190
        %p364 = pneg %p187
        %p365 = pneg %p218
        %p366 = pneg %p215
        %s367 = sand.u32 %s205, 1
        %s368 = scalar_lea.sflag [#allocation4], %s367
        %s369 = sand.u32 %s205, 1
        %s370 = smul.addr %s369, 64
        %s371 = scalar_lea.vmem [#allocation3], %s370
        %p372 = scmp.lt.s32.totalorder %s25, 1
        %s373 = scalar_select %p372, %s25, 1
        %s374 = smul.addr %s373, 16
        %s375 = smul.addr %s374, 4
        %s376 = scalar_lea.vmem %s0, %s375
        %p377 = scmp.lt.s32.totalorder %s26, 1
        %s378 = scalar_select %p377, %s26, 1
        %s379 = scalar_lea.vmem %s2, %s378
        %v381 = vld [vmem:[%s376] sm:$0xf]
        %v382 = vld [vmem:[%s376 + $0x4] sm:$0xf]
        %v383 = vld [vmem:[%s376 + $0x8] sm:$0xf]
        %v384 = vld [vmem:[%s376 + $0xc] sm:$0xf]
        %v385 = vld [vmem:[%s376 + $0x10] sm:$0xf]
        %v386 = vld [vmem:[%s376 + $0x14] sm:$0xf]
        %v387 = vld [vmem:[%s376 + $0x18] sm:$0xf]
        %v388 = vld [vmem:[%s376 + $0x1c] sm:$0xf]
        %v389 = vld [vmem:[%s376 + $0x20] sm:$0xf]
        %v390 = vld [vmem:[%s376 + $0x24] sm:$0xf]
        %v391 = vld [vmem:[%s376 + $0x28] sm:$0xf]
        %v392 = vld [vmem:[%s376 + $0x2c] sm:$0xf]
        %v393 = vld [vmem:[%s376 + $0x30] sm:$0xf]
        %v394 = vld [vmem:[%s376 + $0x34] sm:$0xf]
        %v395 = vld [vmem:[%s376 + $0x38] sm:$0xf]
        %v396 = vld [vmem:[%s376 + $0x3c] sm:$0xf]
        %v397 = vld [vmem:[%s335] sm:$0xf]
        %v398 = vld [vmem:[%s335 + $0x4] sm:$0xf]
        %v399 = vld [vmem:[%s335 + $0x8] sm:$0xf]
        %v400 = vld [vmem:[%s335 + $0xc] sm:$0xf]
        %v401 = vld [vmem:[%s379] sm:$0x1]
        %v403 = vlaneseq
        %v404 = vshrl.u32 %v403, 7
        %v405 = vsub.s32 0, %v404
        %v406 = vrot.slane %v401, %v405
        %v424 = vunpack.c.l.b16 %v381
        %v425 = vunpack.c.l.b16 %v382
        %v426 = vunpack.c.l.b16 %v383
        %v427 = vunpack.c.l.b16 %v384
        %v428 = vunpack.c.l.b16 %v385
        %v429 = vunpack.c.l.b16 %v386
        %v430 = vunpack.c.l.b16 %v387
        %v431 = vunpack.c.l.b16 %v388
        %v432 = vunpack.c.l.b16 %v389
        %v433 = vunpack.c.l.b16 %v390
        %v434 = vunpack.c.l.b16 %v391
        %v435 = vunpack.c.l.b16 %v392
        %v436 = vunpack.c.l.b16 %v393
        %v437 = vunpack.c.l.b16 %v394
        %v438 = vunpack.c.l.b16 %v395
        %v439 = vunpack.c.l.b16 %v396
        %v440 = vpack.c.b16 %v425, %v424
        %v441 = vpack.c.b16 %v427, %v426
        %v442 = vpack.c.b16 %v429, %v428
        %v443 = vpack.c.b16 %v431, %v430
        %v444 = vpack.c.b16 %v433, %v432
        %v445 = vpack.c.b16 %v435, %v434
        %v446 = vpack.c.b16 %v437, %v436
        %v447 = vpack.c.b16 %v439, %v438
        %v452 = vunpack.c.l.b16 %v397
        %v453 = vunpack.c.l.b16 %v398
        %v454 = vunpack.c.l.b16 %v399
        %v455 = vunpack.c.l.b16 %v400
        %v456 = vpack.c.b16 %v453, %v452
        %v457 = vpack.c.b16 %v455, %v454
        %vm460 = vcmask 261120
        %v462 = vsel %vm460, %v440, 0
        %v465 = vsel %vm460, %v441, 0
        %v468 = vsel %vm460, %v442, 0
        %v471 = vsel %vm460, %v443, 0
        %v474 = vsel %vm460, %v444, 0
        %v477 = vsel %vm460, %v445, 0
        %v480 = vsel %vm460, %v446, 0
        %v483 = vsel %vm460, %v447, 0
        %485 = vmatprep.subr.bf16.mxu0 0
        %486 = vmatpush1.bf16.msra.mxu0 0
        %487 = vmatprep.subr.bf16.mxu0 0
        %488 = vmatpush1.bf16.msra.mxu0 0
        %489 = vmatprep.subr.bf16.mxu0 0
        %490 = vmatpush1.bf16.msra.mxu0 0
        %491 = vmatprep.subr.bf16.mxu0 0
        %492 = vmatpush1.bf16.msra.mxu0 0
        %493 = vmatprep.subr.bf16.mxu0 0
        %494 = vmatpush1.bf16.msra.mxu0 0
        %495 = vmatprep.subr.bf16.mxu0 0
        %496 = vmatpush1.bf16.msra.mxu0 0
        %497 = vmatprep.subr.bf16.mxu0 0
        %498 = vmatpush1.bf16.msra.mxu0 %v457
        %499 = vmatprep.subr.bf16.mxu0 0
        %500 = vmatpush1.bf16.msra.mxu0 %v456
        %501 = vmatprep.subr.bf16.mxu0 0
        %502 = vmatpush2.bf16.msra.mxu0 0
        %503 = vmatprep.subr.bf16.mxu0 0
        %504 = vmatpush2.bf16.msra.mxu0 0
        %505 = vmatprep.subr.bf16.mxu0 0
        %506 = vmatpush2.bf16.msra.mxu0 0
        %507 = vmatprep.subr.bf16.mxu0 0
        %508 = vmatpush2.bf16.msra.mxu0 0
        %509 = vmatprep.subr.bf16.mxu0 0
        %510 = vmatpush2.bf16.msra.mxu0 0
        %511 = vmatprep.subr.bf16.mxu0 0
        %512 = vmatpush2.bf16.msra.mxu0 0
        %513 = vmatprep.subr.bf16.mxu0 0
        %514 = vmatpush2.bf16.msra.mxu0 0
        %515 = vmatprep.subr.bf16.mxu0 0
        %516 = vmatpush2.bf16.msra.mxu0 0
        %517 = vmatprep.mubr.bf16.mxu0 0
        %518 = vmatmul.mubr.bf16.gmra.mxu0 %v462
        %v519 = vpop.f32.mrf.mxu0
        %v520 = vadd.f32 %v406, %v519
        %v521 = vpop.f32.mrf.mxu0
        %v522 = vpop.f32.mrf.mxu0
        %v523 = vadd.f32 %v406, %v522
        %v524 = vpop.f32.mrf.mxu0
        %525 = vmatprep.mubr.bf16.mxu0 0
        %526 = vmatmul.mubr.bf16.gmra.mxu0 %v465
        %v527 = vpop.f32.mrf.mxu0
        %v528 = vadd.f32 %v406, %v527
        %v529 = vpop.f32.mrf.mxu0
        %v530 = vpop.f32.mrf.mxu0
        %v531 = vadd.f32 %v406, %v530
        %v532 = vpop.f32.mrf.mxu0
        %533 = vmatprep.mubr.bf16.mxu0 0
        %534 = vmatmul.mubr.bf16.gmra.mxu0 %v468
        %v535 = vpop.f32.mrf.mxu0
        %v536 = vadd.f32 %v406, %v535
        %v537 = vpop.f32.mrf.mxu0
        %v538 = vpop.f32.mrf.mxu0
        %v539 = vadd.f32 %v406, %v538
        %v540 = vpop.f32.mrf.mxu0
        %541 = vmatprep.mubr.bf16.mxu0 0
        %542 = vmatmul.mubr.bf16.gmra.mxu0 %v471
        %v543 = vpop.f32.mrf.mxu0
        %v544 = vadd.f32 %v406, %v543
        %v545 = vpop.f32.mrf.mxu0
        %v546 = vpop.f32.mrf.mxu0
        %v547 = vadd.f32 %v406, %v546
        %v548 = vpop.f32.mrf.mxu0
        %549 = vmatprep.mubr.bf16.mxu0 0
        %550 = vmatmul.mubr.bf16.gmra.mxu0 %v474
        %v551 = vpop.f32.mrf.mxu0
        %v552 = vadd.f32 %v406, %v551
        %v553 = vpop.f32.mrf.mxu0
        %v554 = vpop.f32.mrf.mxu0
        %v555 = vadd.f32 %v406, %v554
        %v556 = vpop.f32.mrf.mxu0
        %557 = vmatprep.mubr.bf16.mxu0 0
        %558 = vmatmul.mubr.bf16.gmra.mxu0 %v477
        %v559 = vpop.f32.mrf.mxu0
        %v560 = vadd.f32 %v406, %v559
        %v561 = vpop.f32.mrf.mxu0
        %v562 = vpop.f32.mrf.mxu0
        %v563 = vadd.f32 %v406, %v562
        %v564 = vpop.f32.mrf.mxu0
        %565 = vmatprep.mubr.bf16.mxu0 0
        %566 = vmatmul.mubr.bf16.gmra.mxu0 %v480
        %v567 = vpop.f32.mrf.mxu0
        %v568 = vadd.f32 %v406, %v567
        %v569 = vpop.f32.mrf.mxu0
        %v570 = vpop.f32.mrf.mxu0
        %v571 = vadd.f32 %v406, %v570
        %v572 = vpop.f32.mrf.mxu0
        %573 = vmatprep.mubr.bf16.mxu0 0
        %574 = vmatmul.mubr.bf16.gmra.mxu0 %v483
        %v575 = vpop.f32.mrf.mxu0
        %v576 = vadd.f32 %v406, %v575
        %v577 = vpop.f32.mrf.mxu0
        %v578 = vpop.f32.mrf.mxu0
        %v579 = vadd.f32 %v406, %v578
        %v580 = vpop.f32.mrf.mxu0
        %581 = vdwg.mxu0
        %v582 = vld [vmem:[%s3] sm:$0xff]
        %v583 = vld [vmem:[%s3 + $0x8] sm:$0xff]
        %v584 = vld [vmem:[%s3 + $0x10] sm:$0xff]
        %v585 = vld [vmem:[%s3 + $0x18] sm:$0xff]
        %v586 = vld [vmem:[%s3 + $0x20] sm:$0xff]
        %v587 = vld [vmem:[%s3 + $0x28] sm:$0xff]
        %v588 = vld [vmem:[%s3 + $0x30] sm:$0xff]
        %v589 = vld [vmem:[%s3 + $0x38] sm:$0xff]
        %v590 = vld [vmem:[%s3 + $0x40] sm:$0xff]
        %v591 = vld [vmem:[%s3 + $0x48] sm:$0xff]
        %v592 = vld [vmem:[%s3 + $0x50] sm:$0xff]
        %v593 = vld [vmem:[%s3 + $0x58] sm:$0xff]
        %v594 = vld [vmem:[%s3 + $0x60] sm:$0xff]
        %v595 = vld [vmem:[%s3 + $0x68] sm:$0xff]
        %v596 = vld [vmem:[%s3 + $0x70] sm:$0xff]
        %v597 = vld [vmem:[%s3 + $0x78] sm:$0xff]
        %v598 = vld [vmem:[%s4] sm:$0xff]
        %v599 = vld [vmem:[%s4 + $0x8] sm:$0xff]
        %v600 = vld [vmem:[%s4 + $0x10] sm:$0xff]
        %v601 = vld [vmem:[%s4 + $0x18] sm:$0xff]
        %v602 = vld [vmem:[%s4 + $0x20] sm:$0xff]
        %v603 = vld [vmem:[%s4 + $0x28] sm:$0xff]
        %v604 = vld [vmem:[%s4 + $0x30] sm:$0xff]
        %v605 = vld [vmem:[%s4 + $0x38] sm:$0xff]
        %v606 = vld [vmem:[%s4 + $0x40] sm:$0xff]
        %v607 = vld [vmem:[%s4 + $0x48] sm:$0xff]
        %v608 = vld [vmem:[%s4 + $0x50] sm:$0xff]
        %v609 = vld [vmem:[%s4 + $0x58] sm:$0xff]
        %v610 = vld [vmem:[%s4 + $0x60] sm:$0xff]
        %v611 = vld [vmem:[%s4 + $0x68] sm:$0xff]
        %v612 = vld [vmem:[%s4 + $0x70] sm:$0xff]
        %v613 = vld [vmem:[%s4 + $0x78] sm:$0xff]
        %v614 = vld [vmem:[%s5] sm:$0xff]
        %v615 = vld [vmem:[%s5 + $0x8] sm:$0xff]
        %v616 = vld [vmem:[%s5 + $0x10] sm:$0xff]
        %v617 = vld [vmem:[%s5 + $0x18] sm:$0xff]
        %v618 = vld [vmem:[%s5 + $0x20] sm:$0xff]
        %v619 = vld [vmem:[%s5 + $0x28] sm:$0xff]
        %v620 = vld [vmem:[%s5 + $0x30] sm:$0xff]
        %v621 = vld [vmem:[%s5 + $0x38] sm:$0xff]
        %v622 = vld [vmem:[%s5 + $0x40] sm:$0xff]
        %v623 = vld [vmem:[%s5 + $0x48] sm:$0xff]
        %v624 = vld [vmem:[%s5 + $0x50] sm:$0xff]
        %v625 = vld [vmem:[%s5 + $0x58] sm:$0xff]
        %v626 = vld [vmem:[%s5 + $0x60] sm:$0xff]
        %v627 = vld [vmem:[%s5 + $0x68] sm:$0xff]
        %v628 = vld [vmem:[%s5 + $0x70] sm:$0xff]
        %v629 = vld [vmem:[%s5 + $0x78] sm:$0xff]
        %vm630 = vcmask 1048064
        %631 = vrot.lane.b32.xlu0 %v520, 64
        %v632 = vpop.permute.xlu0 %631
        %v633 = vsel %vm630, %v632, %v520
        %634 = vrot.lane.b32.xlu0 %v523, 64
        %v635 = vpop.permute.xlu0 %634
        %v636 = vsel %vm630, %v635, %v523
        %637 = vrot.lane.b32.xlu0 %v528, 64
        %v638 = vpop.permute.xlu0 %637
        %v639 = vsel %vm630, %v638, %v528
        %640 = vrot.lane.b32.xlu0 %v531, 64
        %v641 = vpop.permute.xlu0 %640
        %v642 = vsel %vm630, %v641, %v531
        %643 = vrot.lane.b32.xlu0 %v536, 64
        %v644 = vpop.permute.xlu0 %643
        %v645 = vsel %vm630, %v644, %v536
        %646 = vrot.lane.b32.xlu0 %v539, 64
        %v647 = vpop.permute.xlu0 %646
        %v648 = vsel %vm630, %v647, %v539
        %649 = vrot.lane.b32.xlu0 %v544, 64
        %v650 = vpop.permute.xlu0 %649
        %v651 = vsel %vm630, %v650, %v544
        %652 = vrot.lane.b32.xlu0 %v547, 64
        %v653 = vpop.permute.xlu0 %652
        %v654 = vsel %vm630, %v653, %v547
        %655 = vrot.lane.b32.xlu0 %v552, 64
        %v656 = vpop.permute.xlu0 %655
        %v657 = vsel %vm630, %v656, %v552
        %658 = vrot.lane.b32.xlu0 %v555, 64
        %v659 = vpop.permute.xlu0 %658
        %v660 = vsel %vm630, %v659, %v555
        %661 = vrot.lane.b32.xlu0 %v560, 64
        %v662 = vpop.permute.xlu0 %661
        %v663 = vsel %vm630, %v662, %v560
        %664 = vrot.lane.b32.xlu0 %v563, 64
        %v665 = vpop.permute.xlu0 %664
        %v666 = vsel %vm630, %v665, %v563
        %667 = vrot.lane.b32.xlu0 %v568, 64
        %v668 = vpop.permute.xlu0 %667
        %v669 = vsel %vm630, %v668, %v568
        %670 = vrot.lane.b32.xlu0 %v571, 64
        %v671 = vpop.permute.xlu0 %670
        %v672 = vsel %vm630, %v671, %v571
        %673 = vrot.lane.b32.xlu0 %v576, 64
        %v674 = vpop.permute.xlu0 %673
        %v675 = vsel %vm630, %v674, %v576
        %676 = vrot.lane.b32.xlu0 %v579, 64
        %v677 = vpop.permute.xlu0 %676
        %v678 = vsel %vm630, %v677, %v579
        %679 = vrot.lane.b32.xlu0 %v633, 64
        %v680 = vpop.permute.xlu0 %679
        %681 = vrot.lane.b32.xlu0 %v636, 64
        %v682 = vpop.permute.xlu0 %681
        %683 = vrot.lane.b32.xlu0 %v639, 64
        %v684 = vpop.permute.xlu0 %683
        %685 = vrot.lane.b32.xlu0 %v642, 64
        %v686 = vpop.permute.xlu0 %685
        %687 = vrot.lane.b32.xlu0 %v645, 64
        %v688 = vpop.permute.xlu0 %687
        %689 = vrot.lane.b32.xlu0 %v648, 64
        %v690 = vpop.permute.xlu0 %689
        %691 = vrot.lane.b32.xlu0 %v651, 64
        %v692 = vpop.permute.xlu0 %691
        %693 = vrot.lane.b32.xlu0 %v654, 64
        %v694 = vpop.permute.xlu0 %693
        %695 = vrot.lane.b32.xlu0 %v657, 64
        %v696 = vpop.permute.xlu0 %695
        %697 = vrot.lane.b32.xlu0 %v660, 64
        %v698 = vpop.permute.xlu0 %697
        %699 = vrot.lane.b32.xlu0 %v663, 64
        %v700 = vpop.permute.xlu0 %699
        %701 = vrot.lane.b32.xlu0 %v666, 64
        %v702 = vpop.permute.xlu0 %701
        %703 = vrot.lane.b32.xlu0 %v669, 64
        %v704 = vpop.permute.xlu0 %703
        %705 = vrot.lane.b32.xlu0 %v672, 64
        %v706 = vpop.permute.xlu0 %705
        %707 = vrot.lane.b32.xlu0 %v675, 64
        %v708 = vpop.permute.xlu0 %707
        %709 = vrot.lane.b32.xlu0 %v678, 64
        %v710 = vpop.permute.xlu0 %709
        %v711 = vsel %vm630, %v680, %v520
        %v712 = vsel %vm630, %v682, %v523
        %v713 = vsel %vm630, %v684, %v528
        %v714 = vsel %vm630, %v686, %v531
        %v715 = vsel %vm630, %v688, %v536
        %v716 = vsel %vm630, %v690, %v539
        %v717 = vsel %vm630, %v692, %v544
        %v718 = vsel %vm630, %v694, %v547
        %v719 = vsel %vm630, %v696, %v552
        %v720 = vsel %vm630, %v698, %v555
        %v721 = vsel %vm630, %v700, %v560
        %v722 = vsel %vm630, %v702, %v563
        %v723 = vsel %vm630, %v704, %v568
        %v724 = vsel %vm630, %v706, %v571
        %v725 = vsel %vm630, %v708, %v576
        %v726 = vsel %vm630, %v710, %v579
        %743 = vrot.lane.b32.xlu0 %v598, 1
        %v744 = vpop.permute.xlu0 %743
        %745 = vrot.lane.b32.xlu0 %v599, 1
        %v746 = vpop.permute.xlu0 %745
        %747 = vrot.lane.b32.xlu0 %v600, 1
        %v748 = vpop.permute.xlu0 %747
        %749 = vrot.lane.b32.xlu0 %v601, 1
        %v750 = vpop.permute.xlu0 %749
        %751 = vrot.lane.b32.xlu0 %v602, 1
        %v752 = vpop.permute.xlu0 %751
        %753 = vrot.lane.b32.xlu0 %v603, 1
        %v754 = vpop.permute.xlu0 %753
        %755 = vrot.lane.b32.xlu0 %v604, 1
        %v756 = vpop.permute.xlu0 %755
        %757 = vrot.lane.b32.xlu0 %v605, 1
        %v758 = vpop.permute.xlu0 %757
        %759 = vrot.lane.b32.xlu0 %v606, 1
        %v760 = vpop.permute.xlu0 %759
        %761 = vrot.lane.b32.xlu0 %v607, 1
        %v762 = vpop.permute.xlu0 %761
        %763 = vrot.lane.b32.xlu0 %v608, 1
        %v764 = vpop.permute.xlu0 %763
        %765 = vrot.lane.b32.xlu0 %v609, 1
        %v766 = vpop.permute.xlu0 %765
        %767 = vrot.lane.b32.xlu0 %v610, 1
        %v768 = vpop.permute.xlu0 %767
        %769 = vrot.lane.b32.xlu0 %v611, 1
        %v770 = vpop.permute.xlu0 %769
        %771 = vrot.lane.b32.xlu0 %v612, 1
        %v772 = vpop.permute.xlu0 %771
        %773 = vrot.lane.b32.xlu0 %v613, 1
        %v774 = vpop.permute.xlu0 %773
        %v791 = vmul.f32 %v711, %v744
        %v792 = vmul.f32 %v712, %v746
        %v793 = vmul.f32 %v713, %v748
        %v794 = vmul.f32 %v714, %v750
        %v795 = vmul.f32 %v715, %v752
        %v796 = vmul.f32 %v716, %v754
        %v797 = vmul.f32 %v717, %v756
        %v798 = vmul.f32 %v718, %v758
        %v799 = vmul.f32 %v719, %v760
        %v800 = vmul.f32 %v720, %v762
        %v801 = vmul.f32 %v721, %v764
        %v802 = vmul.f32 %v722, %v766
        %v803 = vmul.f32 %v723, %v768
        %v804 = vmul.f32 %v724, %v770
        %v805 = vmul.f32 %v725, %v772
        %v806 = vmul.f32 %v726, %v774
        %823 = vrot.lane.b32.xlu0 %v614, 63
        %v824 = vpop.permute.xlu0 %823
        %825 = vrot.lane.b32.xlu0 %v615, 63
        %v826 = vpop.permute.xlu0 %825
        %827 = vrot.lane.b32.xlu0 %v616, 63
        %v828 = vpop.permute.xlu0 %827
        %829 = vrot.lane.b32.xlu0 %v617, 63
        %v830 = vpop.permute.xlu0 %829
        %831 = vrot.lane.b32.xlu0 %v618, 63
        %v832 = vpop.permute.xlu0 %831
        %833 = vrot.lane.b32.xlu0 %v619, 63
        %v834 = vpop.permute.xlu0 %833
        %835 = vrot.lane.b32.xlu0 %v620, 63
        %v836 = vpop.permute.xlu0 %835
        %837 = vrot.lane.b32.xlu0 %v621, 63
        %v838 = vpop.permute.xlu0 %837
        %839 = vrot.lane.b32.xlu0 %v622, 63
        %v840 = vpop.permute.xlu0 %839
        %841 = vrot.lane.b32.xlu0 %v623, 63
        %v842 = vpop.permute.xlu0 %841
        %843 = vrot.lane.b32.xlu0 %v624, 63
        %v844 = vpop.permute.xlu0 %843
        %845 = vrot.lane.b32.xlu0 %v625, 63
        %v846 = vpop.permute.xlu0 %845
        %847 = vrot.lane.b32.xlu0 %v626, 63
        %v848 = vpop.permute.xlu0 %847
        %849 = vrot.lane.b32.xlu0 %v627, 63
        %v850 = vpop.permute.xlu0 %849
        %851 = vrot.lane.b32.xlu0 %v628, 63
        %v852 = vpop.permute.xlu0 %851
        %853 = vrot.lane.b32.xlu0 %v629, 63
        %v854 = vpop.permute.xlu0 %853
        %v871 = vmul.f32 %v711, %v824
        %v872 = vmul.f32 %v712, %v826
        %v873 = vmul.f32 %v713, %v828
        %v874 = vmul.f32 %v714, %v830
        %v875 = vmul.f32 %v715, %v832
        %v876 = vmul.f32 %v716, %v834
        %v877 = vmul.f32 %v717, %v836
        %v878 = vmul.f32 %v718, %v838
        %v879 = vmul.f32 %v719, %v840
        %v880 = vmul.f32 %v720, %v842
        %v881 = vmul.f32 %v721, %v844
        %v882 = vmul.f32 %v722, %v846
        %v883 = vmul.f32 %v723, %v848
        %v884 = vmul.f32 %v724, %v850
        %v885 = vmul.f32 %v725, %v852
        %v886 = vmul.f32 %v726, %v854
        %903 = vrot.lane.b32.xlu0 %v871, 66
        %v904 = vpop.permute.xlu0 %903
        %905 = vrot.lane.b32.xlu0 %v872, 66
        %v906 = vpop.permute.xlu0 %905
        %907 = vrot.lane.b32.xlu0 %v873, 66
        %v908 = vpop.permute.xlu0 %907
        %909 = vrot.lane.b32.xlu0 %v874, 66
        %v910 = vpop.permute.xlu0 %909
        %911 = vrot.lane.b32.xlu0 %v875, 66
        %v912 = vpop.permute.xlu0 %911
        %913 = vrot.lane.b32.xlu0 %v876, 66
        %v914 = vpop.permute.xlu0 %913
        %915 = vrot.lane.b32.xlu0 %v877, 66
        %v916 = vpop.permute.xlu0 %915
        %917 = vrot.lane.b32.xlu0 %v878, 66
        %v918 = vpop.permute.xlu0 %917
        %919 = vrot.lane.b32.xlu0 %v879, 66
        %v920 = vpop.permute.xlu0 %919
        %921 = vrot.lane.b32.xlu0 %v880, 66
        %v922 = vpop.permute.xlu0 %921
        %923 = vrot.lane.b32.xlu0 %v881, 66
        %v924 = vpop.permute.xlu0 %923
        %925 = vrot.lane.b32.xlu0 %v882, 66
        %v926 = vpop.permute.xlu0 %925
        %927 = vrot.lane.b32.xlu0 %v883, 66
        %v928 = vpop.permute.xlu0 %927
        %929 = vrot.lane.b32.xlu0 %v884, 66
        %v930 = vpop.permute.xlu0 %929
        %931 = vrot.lane.b32.xlu0 %v885, 66
        %v932 = vpop.permute.xlu0 %931
        %933 = vrot.lane.b32.xlu0 %v886, 66
        %v934 = vpop.permute.xlu0 %933
        %v951 = vadd.f32 %v791, %v904
        %v952 = vadd.f32 %v792, %v906
        %v953 = vadd.f32 %v793, %v908
        %v954 = vadd.f32 %v794, %v910
        %v955 = vadd.f32 %v795, %v912
        %v956 = vadd.f32 %v796, %v914
        %v957 = vadd.f32 %v797, %v916
        %v958 = vadd.f32 %v798, %v918
        %v959 = vadd.f32 %v799, %v920
        %v960 = vadd.f32 %v800, %v922
        %v961 = vadd.f32 %v801, %v924
        %v962 = vadd.f32 %v802, %v926
        %v963 = vadd.f32 %v803, %v928
        %v964 = vadd.f32 %v804, %v930
        %v965 = vadd.f32 %v805, %v932
        %v966 = vadd.f32 %v806, %v934
        %v967 = vmul.f32 %v520, %v582
        %v968 = vmul.f32 %v523, %v583
        %v969 = vmul.f32 %v528, %v584
        %v970 = vmul.f32 %v531, %v585
        %v971 = vmul.f32 %v536, %v586
        %v972 = vmul.f32 %v539, %v587
        %v973 = vmul.f32 %v544, %v588
        %v974 = vmul.f32 %v547, %v589
        %v975 = vmul.f32 %v552, %v590
        %v976 = vmul.f32 %v555, %v591
        %v977 = vmul.f32 %v560, %v592
        %v978 = vmul.f32 %v563, %v593
        %v979 = vmul.f32 %v568, %v594
        %v980 = vmul.f32 %v571, %v595
        %v981 = vmul.f32 %v576, %v596
        %v982 = vmul.f32 %v579, %v597
        %999 = vrot.lane.b32.xlu0 %v951, 127
        %v1000 = vpop.permute.xlu0 %999
        %1001 = vrot.lane.b32.xlu0 %v952, 127
        %v1002 = vpop.permute.xlu0 %1001
        %1003 = vrot.lane.b32.xlu0 %v953, 127
        %v1004 = vpop.permute.xlu0 %1003
        %1005 = vrot.lane.b32.xlu0 %v954, 127
        %v1006 = vpop.permute.xlu0 %1005
        %1007 = vrot.lane.b32.xlu0 %v955, 127
        %v1008 = vpop.permute.xlu0 %1007
        %1009 = vrot.lane.b32.xlu0 %v956, 127
        %v1010 = vpop.permute.xlu0 %1009
        %1011 = vrot.lane.b32.xlu0 %v957, 127
        %v1012 = vpop.permute.xlu0 %1011
        %1013 = vrot.lane.b32.xlu0 %v958, 127
        %v1014 = vpop.permute.xlu0 %1013
        %1015 = vrot.lane.b32.xlu0 %v959, 127
        %v1016 = vpop.permute.xlu0 %1015
        %1017 = vrot.lane.b32.xlu0 %v960, 127
        %v1018 = vpop.permute.xlu0 %1017
        %1019 = vrot.lane.b32.xlu0 %v961, 127
        %v1020 = vpop.permute.xlu0 %1019
        %1021 = vrot.lane.b32.xlu0 %v962, 127
        %v1022 = vpop.permute.xlu0 %1021
        %1023 = vrot.lane.b32.xlu0 %v963, 127
        %v1024 = vpop.permute.xlu0 %1023
        %1025 = vrot.lane.b32.xlu0 %v964, 127
        %v1026 = vpop.permute.xlu0 %1025
        %1027 = vrot.lane.b32.xlu0 %v965, 127
        %v1028 = vpop.permute.xlu0 %1027
        %1029 = vrot.lane.b32.xlu0 %v966, 127
        %v1030 = vpop.permute.xlu0 %1029
        %v1047 = vadd.f32 %v967, %v1000
        %v1048 = vadd.f32 %v968, %v1002
        %v1049 = vadd.f32 %v969, %v1004
        %v1050 = vadd.f32 %v970, %v1006
        %v1051 = vadd.f32 %v971, %v1008
        %v1052 = vadd.f32 %v972, %v1010
        %v1053 = vadd.f32 %v973, %v1012
        %v1054 = vadd.f32 %v974, %v1014
        %v1055 = vadd.f32 %v975, %v1016
        %v1056 = vadd.f32 %v976, %v1018
        %v1057 = vadd.f32 %v977, %v1020
        %v1058 = vadd.f32 %v978, %v1022
        %v1059 = vadd.f32 %v979, %v1024
        %v1060 = vadd.f32 %v980, %v1026
        %v1061 = vadd.f32 %v981, %v1028
        %v1062 = vadd.f32 %v982, %v1030
        %v1063 = vpack.c.bf16 %v1048, %v1047
        %v1064 = vpack.c.bf16 %v1050, %v1049
        %v1065 = vpack.c.bf16 %v1052, %v1051
        %v1066 = vpack.c.bf16 %v1054, %v1053
        %v1067 = vpack.c.bf16 %v1056, %v1055
        %v1068 = vpack.c.bf16 %v1058, %v1057
        %v1069 = vpack.c.bf16 %v1060, %v1059
        %v1070 = vpack.c.bf16 %v1062, %v1061
        %1087 = vrot.lane.b32.xlu0 %v582, 64
        %v1088 = vpop.permute.xlu0 %1087
        %1089 = vrot.lane.b32.xlu0 %v583, 64
        %v1090 = vpop.permute.xlu0 %1089
        %1091 = vrot.lane.b32.xlu0 %v584, 64
        %v1092 = vpop.permute.xlu0 %1091
        %1093 = vrot.lane.b32.xlu0 %v585, 64
        %v1094 = vpop.permute.xlu0 %1093
        %1095 = vrot.lane.b32.xlu0 %v586, 64
        %v1096 = vpop.permute.xlu0 %1095
        %1097 = vrot.lane.b32.xlu0 %v587, 64
        %v1098 = vpop.permute.xlu0 %1097
        %1099 = vrot.lane.b32.xlu0 %v588, 64
        %v1100 = vpop.permute.xlu0 %1099
        %1101 = vrot.lane.b32.xlu0 %v589, 64
        %v1102 = vpop.permute.xlu0 %1101
        %1103 = vrot.lane.b32.xlu0 %v590, 64
        %v1104 = vpop.permute.xlu0 %1103
        %1105 = vrot.lane.b32.xlu0 %v591, 64
        %v1106 = vpop.permute.xlu0 %1105
        %1107 = vrot.lane.b32.xlu0 %v592, 64
        %v1108 = vpop.permute.xlu0 %1107
        %1109 = vrot.lane.b32.xlu0 %v593, 64
        %v1110 = vpop.permute.xlu0 %1109
        %1111 = vrot.lane.b32.xlu0 %v594, 64
        %v1112 = vpop.permute.xlu0 %1111
        %1113 = vrot.lane.b32.xlu0 %v595, 64
        %v1114 = vpop.permute.xlu0 %1113
        %1115 = vrot.lane.b32.xlu0 %v596, 64
        %v1116 = vpop.permute.xlu0 %1115
        %1117 = vrot.lane.b32.xlu0 %v597, 64
        %v1118 = vpop.permute.xlu0 %1117
        %v1135 = vmul.f32 %v520, %v1088
        %v1136 = vmul.f32 %v523, %v1090
        %v1137 = vmul.f32 %v528, %v1092
        %v1138 = vmul.f32 %v531, %v1094
        %v1139 = vmul.f32 %v536, %v1096
        %v1140 = vmul.f32 %v539, %v1098
        %v1141 = vmul.f32 %v544, %v1100
        %v1142 = vmul.f32 %v547, %v1102
        %v1143 = vmul.f32 %v552, %v1104
        %v1144 = vmul.f32 %v555, %v1106
        %v1145 = vmul.f32 %v560, %v1108
        %v1146 = vmul.f32 %v563, %v1110
        %v1147 = vmul.f32 %v568, %v1112
        %v1148 = vmul.f32 %v571, %v1114
        %v1149 = vmul.f32 %v576, %v1116
        %v1150 = vmul.f32 %v579, %v1118
        %1151 = vrot.lane.b32.xlu0 %v951, 63
        %v1152 = vpop.permute.xlu0 %1151
        %1153 = vrot.lane.b32.xlu0 %v952, 63
        %v1154 = vpop.permute.xlu0 %1153
        %1155 = vrot.lane.b32.xlu0 %v953, 63
        %v1156 = vpop.permute.xlu0 %1155
        %1157 = vrot.lane.b32.xlu0 %v954, 63
        %v1158 = vpop.permute.xlu0 %1157
        %1159 = vrot.lane.b32.xlu0 %v955, 63
        %v1160 = vpop.permute.xlu0 %1159
        %1161 = vrot.lane.b32.xlu0 %v956, 63
        %v1162 = vpop.permute.xlu0 %1161
        %1163 = vrot.lane.b32.xlu0 %v957, 63
        %v1164 = vpop.permute.xlu0 %1163
        %1165 = vrot.lane.b32.xlu0 %v958, 63
        %v1166 = vpop.permute.xlu0 %1165
        %1167 = vrot.lane.b32.xlu0 %v959, 63
        %v1168 = vpop.permute.xlu0 %1167
        %1169 = vrot.lane.b32.xlu0 %v960, 63
        %v1170 = vpop.permute.xlu0 %1169
        %1171 = vrot.lane.b32.xlu0 %v961, 63
        %v1172 = vpop.permute.xlu0 %1171
        %1173 = vrot.lane.b32.xlu0 %v962, 63
        %v1174 = vpop.permute.xlu0 %1173
        %1175 = vrot.lane.b32.xlu0 %v963, 63
        %v1176 = vpop.permute.xlu0 %1175
        %1177 = vrot.lane.b32.xlu0 %v964, 63
        %v1178 = vpop.permute.xlu0 %1177
        %1179 = vrot.lane.b32.xlu0 %v965, 63
        %v1180 = vpop.permute.xlu0 %1179
        %1181 = vrot.lane.b32.xlu0 %v966, 63
        %v1182 = vpop.permute.xlu0 %1181
        %v1199 = vadd.f32 %v1135, %v1152
        %v1200 = vadd.f32 %v1136, %v1154
        %v1201 = vadd.f32 %v1137, %v1156
        %v1202 = vadd.f32 %v1138, %v1158
        %v1203 = vadd.f32 %v1139, %v1160
        %v1204 = vadd.f32 %v1140, %v1162
        %v1205 = vadd.f32 %v1141, %v1164
        %v1206 = vadd.f32 %v1142, %v1166
        %v1207 = vadd.f32 %v1143, %v1168
        %v1208 = vadd.f32 %v1144, %v1170
        %v1209 = vadd.f32 %v1145, %v1172
        %v1210 = vadd.f32 %v1146, %v1174
        %v1211 = vadd.f32 %v1147, %v1176
        %v1212 = vadd.f32 %v1148, %v1178
        %v1213 = vadd.f32 %v1149, %v1180
        %v1214 = vadd.f32 %v1150, %v1182
        %v1215 = vpack.c.bf16 %v1200, %v1199
        %v1216 = vpack.c.bf16 %v1202, %v1201
        %v1217 = vpack.c.bf16 %v1204, %v1203
        %v1218 = vpack.c.bf16 %v1206, %v1205
        %v1219 = vpack.c.bf16 %v1208, %v1207
        %v1220 = vpack.c.bf16 %v1210, %v1209
        %v1221 = vpack.c.bf16 %v1212, %v1211
        %v1222 = vpack.c.bf16 %v1214, %v1213
        %v1223 = vld [vmem:[%s6] sm:$0xff]
        %v1224 = vld [vmem:[%s6 + $0x8] sm:$0xff]
        %v1225 = vld [vmem:[%s6 + $0x10] sm:$0xff]
        %v1226 = vld [vmem:[%s6 + $0x18] sm:$0xff]
        %v1227 = vld [vmem:[%s6 + $0x20] sm:$0xff]
        %v1228 = vld [vmem:[%s6 + $0x28] sm:$0xff]
        %v1229 = vld [vmem:[%s6 + $0x30] sm:$0xff]
        %v1230 = vld [vmem:[%s6 + $0x38] sm:$0xff]
        %v1231 = vld [vmem:[%s6 + $0x40] sm:$0xff]
        %v1232 = vld [vmem:[%s6 + $0x48] sm:$0xff]
        %v1233 = vld [vmem:[%s6 + $0x50] sm:$0xff]
        %v1234 = vld [vmem:[%s6 + $0x58] sm:$0xff]
        %v1235 = vld [vmem:[%s6 + $0x60] sm:$0xff]
        %v1236 = vld [vmem:[%s6 + $0x68] sm:$0xff]
        %v1237 = vld [vmem:[%s6 + $0x70] sm:$0xff]
        %v1238 = vld [vmem:[%s6 + $0x78] sm:$0xff]
        %1247 = vrot.lane.b32.xlu0 %v1215, 64
        %v1248 = vpop.permute.xlu0 %1247
        %1249 = vrot.lane.b32.xlu0 %v1216, 64
        %v1250 = vpop.permute.xlu0 %1249
        %1251 = vrot.lane.b32.xlu0 %v1217, 64
        %v1252 = vpop.permute.xlu0 %1251
        %1253 = vrot.lane.b32.xlu0 %v1218, 64
        %v1254 = vpop.permute.xlu0 %1253
        %1255 = vrot.lane.b32.xlu0 %v1219, 64
        %v1256 = vpop.permute.xlu0 %1255
        %1257 = vrot.lane.b32.xlu0 %v1220, 64
        %v1258 = vpop.permute.xlu0 %1257
        %1259 = vrot.lane.b32.xlu0 %v1221, 64
        %v1260 = vpop.permute.xlu0 %1259
        %1261 = vrot.lane.b32.xlu0 %v1222, 64
        %v1262 = vpop.permute.xlu0 %1261
        %vm1263 = vcmask 523264
        %v1265 = vsel %vm1263, %v1063, 0
        %v1268 = vsel %vm1263, %v1064, 0
        %v1271 = vsel %vm1263, %v1065, 0
        %v1274 = vsel %vm1263, %v1066, 0
        %v1277 = vsel %vm1263, %v1067, 0
        %v1280 = vsel %vm1263, %v1068, 0
        %v1283 = vsel %vm1263, %v1069, 0
        %v1286 = vsel %vm1263, %v1070, 0
        %v1289 = vsel %vm1263, %v1248, 0
        %v1292 = vsel %vm1263, %v1250, 0
        %v1295 = vsel %vm1263, %v1252, 0
        %v1298 = vsel %vm1263, %v1254, 0
        %v1301 = vsel %vm1263, %v1256, 0
        %v1304 = vsel %vm1263, %v1258, 0
        %v1307 = vsel %vm1263, %v1260, 0
        %v1310 = vsel %vm1263, %v1262, 0
        %1312 = vmatprep.subr.bf16.mxu0 0
        %1313 = vmatpush1.bf16.xpose.msra.mxu0 %v1310
        %1314 = vmatprep.subr.bf16.mxu0 0
        %1315 = vmatpush1.bf16.xpose.msra.mxu0 %v1307
        %1316 = vmatprep.subr.bf16.mxu0 0
        %1317 = vmatpush1.bf16.xpose.msra.mxu0 %v1304
        %1318 = vmatprep.subr.bf16.mxu0 0
        %1319 = vmatpush1.bf16.xpose.msra.mxu0 %v1301
        %1320 = vmatprep.subr.bf16.mxu0 0
        %1321 = vmatpush1.bf16.xpose.msra.mxu0 %v1298
        %1322 = vmatprep.subr.bf16.mxu0 0
        %1323 = vmatpush1.bf16.xpose.msra.mxu0 %v1295
        %1324 = vmatprep.subr.bf16.mxu0 0
        %1325 = vmatpush1.bf16.xpose.msra.mxu0 %v1292
        %1326 = vmatprep.subr.bf16.mxu0 0
        %1327 = vmatpush1.bf16.xpose.msra.mxu0 %v1289
        %1328 = vmatprep.subr.bf16.mxu0 0
        %1329 = vmatpush2.bf16.xpose.msra.mxu0 0
        %1330 = vmatprep.subr.bf16.mxu0 0
        %1331 = vmatpush2.bf16.xpose.msra.mxu0 0
        %1332 = vmatprep.subr.bf16.mxu0 0
        %1333 = vmatpush2.bf16.xpose.msra.mxu0 0
        %1334 = vmatprep.subr.bf16.mxu0 0
        %1335 = vmatpush2.bf16.xpose.msra.mxu0 0
        %1336 = vmatprep.subr.bf16.mxu0 0
        %1337 = vmatpush2.bf16.xpose.msra.mxu0 0
        %1338 = vmatprep.subr.bf16.mxu0 0
        %1339 = vmatpush2.bf16.xpose.msra.mxu0 0
        %1340 = vmatprep.subr.bf16.mxu0 0
        %1341 = vmatpush2.bf16.xpose.msra.mxu0 0
        %1342 = vmatprep.subr.bf16.mxu0 0
        %1343 = vmatpush2.bf16.xpose.msra.mxu0 0
        %1344 = vmatprep.mubr.bf16.mxu0 0
        %1345 = vmatmul.mubr.bf16.gmra.mxu0 %v1265
        %v1346 = vpop.f32.mrf.mxu0
        %v1347 = vadd.f32 %v1223, %v1346
        %v1348 = vpop.f32.mrf.mxu0
        %v1349 = vpop.f32.mrf.mxu0
        %v1350 = vadd.f32 %v1224, %v1349
        %v1351 = vpop.f32.mrf.mxu0
        %1352 = vmatprep.mubr.bf16.mxu0 0
        %1353 = vmatmul.mubr.bf16.gmra.mxu0 %v1268
        %v1354 = vpop.f32.mrf.mxu0
        %v1355 = vadd.f32 %v1225, %v1354
        %v1356 = vpop.f32.mrf.mxu0
        %v1357 = vpop.f32.mrf.mxu0
        %v1358 = vadd.f32 %v1226, %v1357
        %v1359 = vpop.f32.mrf.mxu0
        %1360 = vmatprep.mubr.bf16.mxu0 0
        %1361 = vmatmul.mubr.bf16.gmra.mxu0 %v1271
        %v1362 = vpop.f32.mrf.mxu0
        %v1363 = vadd.f32 %v1227, %v1362
        %v1364 = vpop.f32.mrf.mxu0
        %v1365 = vpop.f32.mrf.mxu0
        %v1366 = vadd.f32 %v1228, %v1365
        %v1367 = vpop.f32.mrf.mxu0
        %1368 = vmatprep.mubr.bf16.mxu0 0
        %1369 = vmatmul.mubr.bf16.gmra.mxu0 %v1274
        %v1370 = vpop.f32.mrf.mxu0
        %v1371 = vadd.f32 %v1229, %v1370
        %v1372 = vpop.f32.mrf.mxu0
        %v1373 = vpop.f32.mrf.mxu0
        %v1374 = vadd.f32 %v1230, %v1373
        %v1375 = vpop.f32.mrf.mxu0
        %1376 = vmatprep.mubr.bf16.mxu0 0
        %1377 = vmatmul.mubr.bf16.gmra.mxu0 %v1277
        %v1378 = vpop.f32.mrf.mxu0
        %v1379 = vadd.f32 %v1231, %v1378
        %v1380 = vpop.f32.mrf.mxu0
        %v1381 = vpop.f32.mrf.mxu0
        %v1382 = vadd.f32 %v1232, %v1381
        %v1383 = vpop.f32.mrf.mxu0
        %1384 = vmatprep.mubr.bf16.mxu0 0
        %1385 = vmatmul.mubr.bf16.gmra.mxu0 %v1280
        %v1386 = vpop.f32.mrf.mxu0
        %v1387 = vadd.f32 %v1233, %v1386
        %v1388 = vpop.f32.mrf.mxu0
        %v1389 = vpop.f32.mrf.mxu0
        %v1390 = vadd.f32 %v1234, %v1389
        %v1391 = vpop.f32.mrf.mxu0
        %1392 = vmatprep.mubr.bf16.mxu0 0
        %1393 = vmatmul.mubr.bf16.gmra.mxu0 %v1283
        %v1394 = vpop.f32.mrf.mxu0
        %v1395 = vadd.f32 %v1235, %v1394
        %v1396 = vpop.f32.mrf.mxu0
        %v1397 = vpop.f32.mrf.mxu0
        %v1398 = vadd.f32 %v1236, %v1397
        %v1399 = vpop.f32.mrf.mxu0
        %1400 = vmatprep.mubr.bf16.mxu0 0
        %1401 = vmatmul.mubr.bf16.gmra.mxu0 %v1286
        %v1402 = vpop.f32.mrf.mxu0
        %v1403 = vadd.f32 %v1237, %v1402
        %v1404 = vpop.f32.mrf.mxu0
        %v1405 = vpop.f32.mrf.mxu0
        %v1406 = vadd.f32 %v1238, %v1405
        %v1407 = vpop.f32.mrf.mxu0
        %1408 = vdwg.mxu0
        %v1409 = vpack.c.bf16 %v1350, %v1347
        %v1410 = vpack.c.bf16 %v1358, %v1355
        %v1411 = vpack.c.bf16 %v1366, %v1363
        %v1412 = vpack.c.bf16 %v1374, %v1371
        %v1413 = vpack.c.bf16 %v1382, %v1379
        %v1414 = vpack.c.bf16 %v1390, %v1387
        %v1415 = vpack.c.bf16 %v1398, %v1395
        %v1416 = vpack.c.bf16 %v1406, %v1403
        %v1425 = vunpack.c.l.b16 %v1409
        %v1426 = vunpack.c.h.b16 %v1409
        %v1427 = vunpack.c.l.b16 %v1410
        %v1428 = vunpack.c.h.b16 %v1410
        %v1429 = vunpack.c.l.b16 %v1411
        %v1430 = vunpack.c.h.b16 %v1411
        %v1431 = vunpack.c.l.b16 %v1412
        %v1432 = vunpack.c.h.b16 %v1412
        %v1433 = vunpack.c.l.b16 %v1413
        %v1434 = vunpack.c.h.b16 %v1413
        %v1435 = vunpack.c.l.b16 %v1414
        %v1436 = vunpack.c.h.b16 %v1414
        %v1437 = vunpack.c.l.b16 %v1415
        %v1438 = vunpack.c.h.b16 %v1415
        %v1439 = vunpack.c.l.b16 %v1416
        %v1440 = vunpack.c.h.b16 %v1416
        %v1441 = vpack.c.b16 %v1425, %v1425
        %v1442 = vpack.c.b16 %v1426, %v1426
        %v1443 = vpack.c.b16 %v1427, %v1427
        %v1444 = vpack.c.b16 %v1428, %v1428
        %v1445 = vpack.c.b16 %v1429, %v1429
        %v1446 = vpack.c.b16 %v1430, %v1430
        %v1447 = vpack.c.b16 %v1431, %v1431
        %v1448 = vpack.c.b16 %v1432, %v1432
        %v1449 = vpack.c.b16 %v1433, %v1433
        %v1450 = vpack.c.b16 %v1434, %v1434
        %v1451 = vpack.c.b16 %v1435, %v1435
        %v1452 = vpack.c.b16 %v1436, %v1436
        %v1453 = vpack.c.b16 %v1437, %v1437
        %v1454 = vpack.c.b16 %v1438, %v1438
        %v1455 = vpack.c.b16 %v1439, %v1439
        %v1456 = vpack.c.b16 %v1440, %v1440
        %1473 = vst [vmem:[%s371] sm:$0xf] %v1441
        %1474 = vst [vmem:[%s371 + $0x4] sm:$0xf] %v1442
        %1475 = vst [vmem:[%s371 + $0x8] sm:$0xf] %v1443
        %1476 = vst [vmem:[%s371 + $0xc] sm:$0xf] %v1444
        %1477 = vst [vmem:[%s371 + $0x10] sm:$0xf] %v1445
        %1478 = vst [vmem:[%s371 + $0x14] sm:$0xf] %v1446
        %1479 = vst [vmem:[%s371 + $0x18] sm:$0xf] %v1447
        %1480 = vst [vmem:[%s371 + $0x1c] sm:$0xf] %v1448
        %1481 = vst [vmem:[%s371 + $0x20] sm:$0xf] %v1449
        %1482 = vst [vmem:[%s371 + $0x24] sm:$0xf] %v1450
        %1483 = vst [vmem:[%s371 + $0x28] sm:$0xf] %v1451
        %1484 = vst [vmem:[%s371 + $0x2c] sm:$0xf] %v1452
        %1485 = vst [vmem:[%s371 + $0x30] sm:$0xf] %v1453
        %1486 = vst [vmem:[%s371 + $0x34] sm:$0xf] %v1454
        %1487 = vst [vmem:[%s371 + $0x38] sm:$0xf] %v1455
        %1488 = vst [vmem:[%s371 + $0x3c] sm:$0xf] %v1456
        %s1489 = sand.u32 %s205, 1
        %s1490 = scalar_lea.sflag [#allocation4], %s1489
        %s1491 = sand.u32 %s205, 1
        %s1492 = smul.addr %s1491, 64
        %s1493 = scalar_lea.vmem [#allocation3], %s1492
        // Predicated region
        $region90: #{tpu_custom_call.1} parent=84 // pred_check
          %p1494 = pneg %p215
        $region91: #{tpu_custom_call.1} parent=84 // pred_check_branch
          %1496 = sbr.rel (%p1494) target = $region93
        $region92: #{tpu_custom_call.1} parent=84 // pred_region
          %s1498 = ssub.s32 1024, 1024
          %1499 = vsyncadd %s1490, %s1498
          %s1500 = smul.addr %s26, 16
          %s1501 = smul.addr %s25, 32
          %s1502 = sadd.s32 %s1500, %s1501
          %s1503 = smul.addr %s1502, 64
          %s1504 = scalar_lea.hbm %s7, %s1503
          %s1505 = sshll.u32 %s1493, 4
          %s1506 = int_to_ptr.vmem [resolvable:$true] %s1505
          %1511 = dma.vmem_to_hbm [thread:$0]  %s1506, 1024, %s1504, %s1490, 64, 64, 4
        $region93: #{tpu_custom_call.1} parent=84 // pred_fallthru
          _
      $region85: #{tpu_custom_call.1} parent=5 // pred_fallthru
        _
      %p1512 = scmp.le.s32.totalorder 2, %s16
      // Predicated region
      $region94: #{tpu_custom_call.1} parent=5 // pred_check
        %p1513 = pneg %p1512
      $region95: #{tpu_custom_call.1} parent=5 // pred_check_branch
        %1515 = sbr.rel (%p1513) target = $region97
      $region96: #{tpu_custom_call.1} parent=5 // pred_region
        %s1516 = ssub.s32 %s16, 2
        // Predicated region
        $region98: #{tpu_custom_call.1} parent=96 // pred_check
          %p1517 = pneg %p221
        $region99: #{tpu_custom_call.1} parent=96 // pred_check_branch
          %1519 = sbr.rel (%p1517) target = $region101
        $region100: #{tpu_custom_call.1} parent=96 // pred_region
          %s1520 = sand.u32 %s206, 1
          %s1521 = scalar_lea.sflag [#allocation4], %s1520
          %s1522 = sand.u32 %s206, 1
          %s1523 = smul.addr %s1522, 64
          %s1524 = scalar_lea.vmem [#allocation3], %s1523
          %1525 = dma.done %s1521, 1024
        $region101: #{tpu_custom_call.1} parent=96 // pred_fallthru
          _
      $region97: #{tpu_custom_call.1} parent=5 // pred_fallthru
        _
    $region6: #{tpu_custom_call.1} parent=1 // loop_footer
      %s20 = sadd.s32 1, %s16
    $region7: #{tpu_custom_call.1} parent=1 // loop_footer_branch
      %15 = sbr.rel target = $region3
    $region8: #{tpu_custom_call.1} parent=1 // loop_exit
      _
    %1526 = vsyncpa [#allocation4], 1
    %s1527 = scalar_lea.sflag [#allocation4], 1
    %1528 = vsyncpa %s1527, 1

</llo_original>
